<compile_context>
chip_gen: v5e
topology: v5e:2x2
jax: 0.10.0
libtpu: 0.0.40
codegen_flags: <defaults>
</compile_context>

<pallas_src>
import functools

import numpy as np
import jax
import jax.numpy as jnp
from jax import lax
from jax.experimental import pallas as pl
from jax.experimental.pallas import tpu as pltpu


def _bilinear_matrix(n_out, n_in):
    """1-D bilinear interpolation matrix, align_corners=True (as the module)."""
    A = np.zeros((n_out, n_in), dtype=np.float32)
    for i in range(n_out):
        src = i * (n_in - 1) / (n_out - 1) if n_out > 1 else 0.0
        i0 = min(max(int(np.floor(src)), 0), n_in - 1)
        i1 = min(i0 + 1, n_in - 1)
        f = src - i0
        A[i, i0] += 1.0 - f
        A[i, i1] += f
    return A


def _core_attention_kernel(xlp_ref, xln_ref, xr_ref, wcat_ref, wc_ref,
                           scol_ref, ah_ref, awt_ref, out_ref,
                           tap_scr, y_scr, *, C1, C2, H, W, H2, W2):
    """Grid = (B, C1).  Step (b, c): attention map for batch b (only at c==0,
    kept in VMEM scratch), then the per-channel upsample+matmul chain."""
    f32 = jnp.float32
    c = pl.program_id(1)

    @pl.when(c == 0)
    def _attention_map():
        # ---- conv_2x2_l (stride 2): row phase from the packed view, column
        #      phase via the 0/1 selection matmul, then one fused channel mix.
        for kh in range(2):
            # rows (c, i), cols w of x_l[:, 2i+kh, :]  -- free lane slice
            p = xlp_ref[:, :, kh * W:(kh + 1) * W]            # [C1, H2, W]
            p2 = p.reshape(C1 * H2, W)                        # leading merge
            g = jnp.dot(p2, scol_ref[...],
                        preferred_element_type=f32)           # [C1*H2, 2*W2]
            g3 = g.reshape(C1, H2, 2 * W2)                    # leading split
            for kw in range(2):
                t = kh * 2 + kw
                # flatten (i, j) into the lane axis of the mix operand
                # (static unroll; production shapes would tile H2 via the grid)
                for i in range(H2):
                    tap_scr[t * C1:(t + 1) * C1, i * W2:(i + 1) * W2] = \
                        g3[:, i, kw * W2:(kw + 1) * W2]
        # conv_1x1_r operand: x_r already arrives spatially flat
        tap_scr[4 * C1:4 * C1 + C2, :] = xr_ref[...]

        K = 4 * C1 + C2
        # fused channel mix: conv_2x2_l taps + conv_1x1_r, biases folded in
        z = jnp.dot(wcat_ref[:, :K], tap_scr[...],
                    preferred_element_type=f32)               # [C1, H2*W2]
        z = jnp.maximum(z + wcat_ref[:, K:K + 1], 0.0)        # + (b2+br), ReLU
        # conv_1x1_c + bias + sigmoid
        y = jnp.dot(wc_ref[:, :C1], z, preferred_element_type=f32)
        y = jax.nn.sigmoid(y + wc_ref[:, C1:C1 + 1])          # [C1, H2*W2]
        # stash per-channel [H2, W2] maps for the per-channel chain steps
        for i in range(H2):
            y_scr[:, i, :] = y[:, i * W2:(i + 1) * W2]

    # ---- per-channel final chain: out = ((x_l[c] @ Ah) @ y[c]) @ Aw^T
    xc = xln_ref[...]                                          # [H, W]
    yc = y_scr[c]                                              # [H2, W2]
    t1 = jnp.dot(xc, ah_ref[...], preferred_element_type=f32)  # [H, H2]
    t2 = jnp.dot(t1, yc, preferred_element_type=f32)           # [H, W2]
    out_ref[...] = jnp.dot(t2, awt_ref[...],
                           preferred_element_type=f32)         # [H, W]


def build_core_attention(params, xl_shape, xr_shape):
    """Folds weights once (host/numpy) and returns a jitted forward(x_l, x_r)."""
    B, C1, H, W = xl_shape
    _, C2, Hr, Wr = xr_shape
    assert H == W, "torch.matmul(x_l, y_c) requires square spatial maps"
    assert H % 2 == 0
    H2, W2 = H // 2, W // 2
    S = H2 * W2
    f32 = np.float32

    # ------- host-side weight folding (once per trained model) -------
    w2 = np.asarray(params["w2x2"], f32)                     # [C1, C1, 2, 2]
    wr = np.asarray(params["w1x1_r"], f32).reshape(C1, C2)
    wc = np.asarray(params["w1x1_c"], f32).reshape(C1, C1)
    b2 = np.asarray(params["b2x2"], f32)
    br = np.asarray(params["b1x1_r"], f32)
    bc = np.asarray(params["b1x1_c"], f32)

    # fused first mix: [conv2x2 taps (kh,kw) | conv1x1_r | bias(b2+br)]
    wcat = np.concatenate([w2[:, :, kh, kw] for kh in (0, 1) for kw in (0, 1)]
                          + [wr, (b2 + br)[:, None]], axis=1)  # [C1, 4C1+C2+1]
    wc_b = np.concatenate([wc, bc[:, None]], axis=1)           # [C1, C1+1]

    # column-phase 0/1 selector: scol[w, kw*W2 + j] = (w == 2j + kw)
    scol = np.zeros((W, 2 * W2), f32)
    for kw in range(2):
        scol[np.arange(W2) * 2 + kw, kw * W2 + np.arange(W2)] = 1.0

    ah = _bilinear_matrix(H, H2)                               # [H, H2]
    awt = _bilinear_matrix(W, W2).T                            # [W2, W]

    # module's conditional resize of y_r: resize x_r instead (exactly
    # equivalent since bilinear resize commutes with the 1x1 conv + bias)
    scale = H2 // Hr
    assert scale >= 1 and Hr * scale == H2 and Wr * scale == W2, (
        "x_r spatial must evenly divide x_l spatial // 2")
    if scale > 1:
        uh = jnp.asarray(_bilinear_matrix(H2, Hr))
        uw = jnp.asarray(_bilinear_matrix(W2, Wr))
    else:
        uh = uw = None

    wcat_d = jnp.asarray(wcat)
    wc_b_d = jnp.asarray(wc_b)
    scol_d = jnp.asarray(scol)
    ah_d = jnp.asarray(ah)
    awt_d = jnp.asarray(awt)

    kernel = functools.partial(_core_attention_kernel, C1=C1, C2=C2,
                               H=H, W=W, H2=H2, W2=W2)

    grid_spec = pltpu.PrefetchScalarGridSpec(
        num_scalar_prefetch=0,
        grid=(B, C1),
        in_specs=[
            # packed x_l view [B, C1, H2, 2W]: per-batch, constant over c
            pl.BlockSpec((None, C1, H2, 2 * W), lambda b, c: (b, 0, 0, 0)),
            # natural x_l view [B, C1, H, W]: per-(b, c) channel tile
            pl.BlockSpec((None, None, H, W), lambda b, c: (b, c, 0, 0)),
            # flat x_r view [B, C2, H2*W2]: per-batch, constant over c
            pl.BlockSpec((None, C2, S), lambda b, c: (b, 0, 0)),
            # folded weights: constant index maps -> DMA'd once, VMEM-resident
            pl.BlockSpec((C1, 4 * C1 + C2 + 1), lambda b, c: (0, 0)),
            pl.BlockSpec((C1, C1 + 1), lambda b, c: (0, 0)),
            pl.BlockSpec((W, 2 * W2), lambda b, c: (0, 0)),
            pl.BlockSpec((H, H2), lambda b, c: (0, 0)),
            pl.BlockSpec((W2, W), lambda b, c: (0, 0)),
        ],
        out_specs=pl.BlockSpec((None, None, H, W), lambda b, c: (b, c, 0, 0)),
        scratch_shapes=[
            pltpu.VMEM((4 * C1 + C2, S), jnp.float32),   # fused mix operand
            pltpu.VMEM((C1, H2, W2), jnp.float32),       # attention map
        ],
    )

    call = pl.pallas_call(
        kernel,
        out_shape=jax.ShapeDtypeStruct((B, C1, H, W), jnp.float32),
        grid_spec=grid_spec,
        compiler_params=pltpu.CompilerParams(
            # batch axis shards across v7x's 2 TensorCores; no-op on v5e/v6e
            dimension_semantics=("parallel", "arbitrary"),
            # plenty for the demo tiles; revisit (and tile H2) for production
            vmem_limit_bytes=32 * 1024 * 1024,
        ),
    )

    @jax.jit
    def forward(x_l, x_r):
        if scale > 1:
            x_r = jnp.einsum("hi,bcij,wj->bchw", uh, x_r, uw)
        xlp = x_l.reshape(B, C1, H2, 2 * W)     # free contiguous view
        xrf = x_r.reshape(B, C2, S)             # free contiguous view
        return call(xlp, x_l, xrf, wcat_d, wc_b_d, scol_d, ah_d, awt_d)

    return forward


def reference_forward(x_l, x_r, params):
    """Pure-JAX reference matching the PyTorch forward (HIGHEST precision)."""
    dn = ("NCHW", "OIHW", "NCHW")
    hp = lax.Precision.HIGHEST
    y_l = lax.conv_general_dilated(x_l, params["w2x2"], (2, 2), "VALID",
                                   dimension_numbers=dn, precision=hp)
    y_l = y_l + params["b2x2"][None, :, None, None]
    y_r = lax.conv_general_dilated(x_r, params["w1x1_r"], (1, 1), "VALID",
                                   dimension_numbers=dn, precision=hp)
    y_r = y_r + params["b1x1_r"][None, :, None, None]
    if y_l.shape[2] // y_r.shape[2] != 1:
        s = y_l.shape[2] // y_r.shape[2]
        Uh = jnp.asarray(_bilinear_matrix(y_r.shape[2] * s, y_r.shape[2]))
        Uw = jnp.asarray(_bilinear_matrix(y_r.shape[3] * s, y_r.shape[3]))
        y_r = jnp.einsum("hi,bcij,wj->bchw", Uh, y_r, Uw, precision=hp)
    y = jax.nn.relu(y_l + y_r)
    y = lax.conv_general_dilated(y, params["w1x1_c"], (1, 1), "VALID",
                                 dimension_numbers=dn, precision=hp)
    y = jax.nn.sigmoid(y + params["b1x1_c"][None, :, None, None])
    H = x_l.shape[2]
    A = jnp.asarray(_bilinear_matrix(H, H // 2))
    y_up = jnp.einsum("hi,bcij,wj->bchw", A, y, A, precision=hp)
    return jnp.einsum("bchk,bckw->bchw", x_l, y_up, precision=hp)


if __name__ == "__main__":
    B, C1, C2, H = 2, 4, 8, 16
    key = jax.random.PRNGKey(0)
    ks = jax.random.split(key, 8)
    x_l = jax.random.normal(ks[0], (B, C1, H, H), jnp.float32)
    x_r = jax.random.normal(ks[1], (B, C2, H // 2, H // 2), jnp.float32)
    # deterministic synthetic parameters (shapes per the nn.Module __init__)
    params = {
        "w2x2":   jax.random.normal(ks[2], (C1, C1, 2, 2), jnp.float32) * 0.2,
        "b2x2":   jax.random.normal(ks[3], (C1,), jnp.float32) * 0.1,
        "w1x1_r": jax.random.normal(ks[4], (C1, C2, 1, 1), jnp.float32) * 0.2,
        "b1x1_r": jax.random.normal(ks[5], (C1,), jnp.float32) * 0.1,
        "w1x1_c": jax.random.normal(ks[6], (C1, C1, 1, 1), jnp.float32) * 0.2,
        "b1x1_c": jax.random.normal(ks[7], (C1,), jnp.float32) * 0.1,
    }

    fwd = build_core_attention(params, x_l.shape, x_r.shape)
    out = fwd(x_l, x_r)
    jax.block_until_ready(out)

    ref = reference_forward(x_l, x_r, params)
    # all-f32 kernel vs HIGHEST-precision reference: 1e-4 keeps a wide margin
    # over f32 rounding of this chained computation while catching any
    # layout / folding bug (those show up as O(1) errors).
    if not jnp.allclose(out, ref, atol=1e-4, rtol=1e-4):
        max_err = float(jnp.max(jnp.abs(out - ref)))
        raise AssertionError(f"kernel mismatch vs reference, max abs err = {max_err}")
    print("KERNEL_OK")
</pallas_src>

<mosaic_0001>
module attributes {stable_mosaic.version = 11 : i64} {
  func.func @_core_attention_kernel(%arg0: i32, %arg1: i32, %arg2: memref<1x4x8x32xf32, #tpu.memory_space<vmem>>, %arg3: memref<1x1x16x16xf32, #tpu.memory_space<vmem>>, %arg4: memref<1x8x64xf32, #tpu.memory_space<vmem>>, %arg5: memref<4x25xf32, #tpu.memory_space<vmem>>, %arg6: memref<4x5xf32, #tpu.memory_space<vmem>>, %arg7: memref<16x16xf32, #tpu.memory_space<vmem>>, %arg8: memref<16x8xf32, #tpu.memory_space<vmem>>, %arg9: memref<8x16xf32, #tpu.memory_space<vmem>>, %arg10: memref<1x1x16x16xf32, #tpu.memory_space<vmem>>, %arg11: memref<24x64xf32, #tpu.memory_space<vmem>>, %arg12: memref<4x8x8xf32, #tpu.memory_space<vmem>>) attributes {dimension_semantics = [#tpu.dimension_semantics<parallel>, #tpu.dimension_semantics<arbitrary>], iteration_bounds = array<i64: 2, 4>, scalar_prefetch = 0 : i64, scratch_operands = 2 : i64, tpu.core_type = #tpu.core_type<tc>, window_params = [{transform_indices = @transform_0, window_bounds = array<i64: 1, 4, 8, 32>}, {transform_indices = @transform_1, window_bounds = array<i64: 1, 1, 16, 16>}, {transform_indices = @transform_2, window_bounds = array<i64: 1, 8, 64>}, {pipeline_mode = #tpu.pipeline_mode<synchronous>, transform_indices = @transform_3, window_bounds = array<i64: 4, 25>}, {pipeline_mode = #tpu.pipeline_mode<synchronous>, transform_indices = @transform_4, window_bounds = array<i64: 4, 5>}, {pipeline_mode = #tpu.pipeline_mode<synchronous>, transform_indices = @transform_5, window_bounds = array<i64: 16, 16>}, {pipeline_mode = #tpu.pipeline_mode<synchronous>, transform_indices = @transform_6, window_bounds = array<i64: 16, 8>}, {pipeline_mode = #tpu.pipeline_mode<synchronous>, transform_indices = @transform_7, window_bounds = array<i64: 8, 16>}, {transform_indices = @transform_8, window_bounds = array<i64: 1, 1, 16, 16>}]} {
    %c0_i32 = arith.constant 0 : i32
    %0 = arith.cmpi eq, %arg1, %c0_i32 : i32
    %1 = arith.extui %0 : i1 to i32
    %c0_i32_0 = arith.constant 0 : i32
    %2 = arith.cmpi ne, %1, %c0_i32_0 : i32
    scf.if %2 {
      %c0_16 = arith.constant 0 : index
      %c0_17 = arith.constant 0 : index
      %c0_18 = arith.constant 0 : index
      %c0_19 = arith.constant 0 : index
      %16 = vector.load %arg2[%c0_16, %c0_17, %c0_18, %c0_19] : memref<1x4x8x32xf32, #tpu.memory_space<vmem>>, vector<1x4x8x16xf32>
      %17 = vector.shape_cast %16 : vector<1x4x8x16xf32> to vector<4x8x16xf32>
      %18 = vector.shape_cast %17 : vector<4x8x16xf32> to vector<32x16xf32>
      %c0_20 = arith.constant 0 : index
      %c0_21 = arith.constant 0 : index
      %19 = vector.load %arg7[%c0_20, %c0_21] : memref<16x16xf32, #tpu.memory_space<vmem>>, vector<16x16xf32>
      %cst_22 = arith.constant dense<0.000000e+00> : vector<32x16xf32>
      %20 = tpu.matmul %18, %19, %cst_22 {dimension_numbers = #tpu.dot_dimension_numbers<[1], [0], [0], [1], [0, 0, 1, 1], [], []>} : vector<32x16xf32>, vector<16x16xf32>, vector<32x16xf32> -> vector<32x16xf32>
      %21 = vector.shape_cast %20 : vector<32x16xf32> to vector<4x8x16xf32>
      %22 = vector.extract_strided_slice %21 {offsets = [0, 0, 0], sizes = [4, 1, 8], strides = [1, 1, 1]} : vector<4x8x16xf32> to vector<4x1x8xf32>
      %23 = vector.shape_cast %22 : vector<4x1x8xf32> to vector<4x8xf32>
      %c0_23 = arith.constant 0 : index
      %c0_24 = arith.constant 0 : index
      %24 = vector.load %arg11[%c0_23, %c0_24] : memref<24x64xf32, #tpu.memory_space<vmem>>, vector<4x8xf32>
      tpu.vector_store %arg11[%c0_23, %c0_24], %23 {strides = array<i32>} : memref<24x64xf32, #tpu.memory_space<vmem>>, vector<4x8xf32>,
      %25 = vector.extract_strided_slice %21 {offsets = [0, 1, 0], sizes = [4, 1, 8], strides = [1, 1, 1]} : vector<4x8x16xf32> to vector<4x1x8xf32>
      %26 = vector.shape_cast %25 : vector<4x1x8xf32> to vector<4x8xf32>
      %c0_25 = arith.constant 0 : index
      %c8 = arith.constant 8 : index
      %27 = vector.load %arg11[%c0_25, %c8] : memref<24x64xf32, #tpu.memory_space<vmem>>, vector<4x8xf32>
      tpu.vector_store %arg11[%c0_25, %c8], %26 {strides = array<i32>} : memref<24x64xf32, #tpu.memory_space<vmem>>, vector<4x8xf32>,
      %28 = vector.extract_strided_slice %21 {offsets = [0, 2, 0], sizes = [4, 1, 8], strides = [1, 1, 1]} : vector<4x8x16xf32> to vector<4x1x8xf32>
      %29 = vector.shape_cast %28 : vector<4x1x8xf32> to vector<4x8xf32>
      %c0_26 = arith.constant 0 : index
      %c16 = arith.constant 16 : index
      %30 = vector.load %arg11[%c0_26, %c16] : memref<24x64xf32, #tpu.memory_space<vmem>>, vector<4x8xf32>
      tpu.vector_store %arg11[%c0_26, %c16], %29 {strides = array<i32>} : memref<24x64xf32, #tpu.memory_space<vmem>>, vector<4x8xf32>,
      %31 = vector.extract_strided_slice %21 {offsets = [0, 3, 0], sizes = [4, 1, 8], strides = [1, 1, 1]} : vector<4x8x16xf32> to vector<4x1x8xf32>
      %32 = vector.shape_cast %31 : vector<4x1x8xf32> to vector<4x8xf32>
      %c0_27 = arith.constant 0 : index
      %c24 = arith.constant 24 : index
      %33 = vector.load %arg11[%c0_27, %c24] : memref<24x64xf32, #tpu.memory_space<vmem>>, vector<4x8xf32>
      tpu.vector_store %arg11[%c0_27, %c24], %32 {strides = array<i32>} : memref<24x64xf32, #tpu.memory_space<vmem>>, vector<4x8xf32>,
      %34 = vector.extract_strided_slice %21 {offsets = [0, 4, 0], sizes = [4, 1, 8], strides = [1, 1, 1]} : vector<4x8x16xf32> to vector<4x1x8xf32>
      %35 = vector.shape_cast %34 : vector<4x1x8xf32> to vector<4x8xf32>
      %c0_28 = arith.constant 0 : index
      %c32 = arith.constant 32 : index
      %36 = vector.load %arg11[%c0_28, %c32] : memref<24x64xf32, #tpu.memory_space<vmem>>, vector<4x8xf32>
      tpu.vector_store %arg11[%c0_28, %c32], %35 {strides = array<i32>} : memref<24x64xf32, #tpu.memory_space<vmem>>, vector<4x8xf32>,
      %37 = vector.extract_strided_slice %21 {offsets = [0, 5, 0], sizes = [4, 1, 8], strides = [1, 1, 1]} : vector<4x8x16xf32> to vector<4x1x8xf32>
      %38 = vector.shape_cast %37 : vector<4x1x8xf32> to vector<4x8xf32>
      %c0_29 = arith.constant 0 : index
      %c40 = arith.constant 40 : index
      %39 = vector.load %arg11[%c0_29, %c40] : memref<24x64xf32, #tpu.memory_space<vmem>>, vector<4x8xf32>
      tpu.vector_store %arg11[%c0_29, %c40], %38 {strides = array<i32>} : memref<24x64xf32, #tpu.memory_space<vmem>>, vector<4x8xf32>,
      %40 = vector.extract_strided_slice %21 {offsets = [0, 6, 0], sizes = [4, 1, 8], strides = [1, 1, 1]} : vector<4x8x16xf32> to vector<4x1x8xf32>
      %41 = vector.shape_cast %40 : vector<4x1x8xf32> to vector<4x8xf32>
      %c0_30 = arith.constant 0 : index
      %c48 = arith.constant 48 : index
      %42 = vector.load %arg11[%c0_30, %c48] : memref<24x64xf32, #tpu.memory_space<vmem>>, vector<4x8xf32>
      tpu.vector_store %arg11[%c0_30, %c48], %41 {strides = array<i32>} : memref<24x64xf32, #tpu.memory_space<vmem>>, vector<4x8xf32>,
      %43 = vector.extract_strided_slice %21 {offsets = [0, 7, 0], sizes = [4, 1, 8], strides = [1, 1, 1]} : vector<4x8x16xf32> to vector<4x1x8xf32>
      %44 = vector.shape_cast %43 : vector<4x1x8xf32> to vector<4x8xf32>
      %c0_31 = arith.constant 0 : index
      %c56 = arith.constant 56 : index
      %45 = vector.load %arg11[%c0_31, %c56] : memref<24x64xf32, #tpu.memory_space<vmem>>, vector<4x8xf32>
      tpu.vector_store %arg11[%c0_31, %c56], %44 {strides = array<i32>} : memref<24x64xf32, #tpu.memory_space<vmem>>, vector<4x8xf32>,
      %46 = vector.extract_strided_slice %21 {offsets = [0, 0, 8], sizes = [4, 1, 8], strides = [1, 1, 1]} : vector<4x8x16xf32> to vector<4x1x8xf32>
      %47 = vector.shape_cast %46 : vector<4x1x8xf32> to vector<4x8xf32>
      %c4 = arith.constant 4 : index
      %c0_32 = arith.constant 0 : index
      %48 = vector.load %arg11[%c4, %c0_32] : memref<24x64xf32, #tpu.memory_space<vmem>>, vector<4x8xf32>
      tpu.vector_store %arg11[%c4, %c0_32], %47 {strides = array<i32>} : memref<24x64xf32, #tpu.memory_space<vmem>>, vector<4x8xf32>,
      %49 = vector.extract_strided_slice %21 {offsets = [0, 1, 8], sizes = [4, 1, 8], strides = [1, 1, 1]} : vector<4x8x16xf32> to vector<4x1x8xf32>
      %50 = vector.shape_cast %49 : vector<4x1x8xf32> to vector<4x8xf32>
      %c4_33 = arith.constant 4 : index
      %c8_34 = arith.constant 8 : index
      %51 = vector.load %arg11[%c4_33, %c8_34] : memref<24x64xf32, #tpu.memory_space<vmem>>, vector<4x8xf32>
      tpu.vector_store %arg11[%c4_33, %c8_34], %50 {strides = array<i32>} : memref<24x64xf32, #tpu.memory_space<vmem>>, vector<4x8xf32>,
      %52 = vector.extract_strided_slice %21 {offsets = [0, 2, 8], sizes = [4, 1, 8], strides = [1, 1, 1]} : vector<4x8x16xf32> to vector<4x1x8xf32>
      %53 = vector.shape_cast %52 : vector<4x1x8xf32> to vector<4x8xf32>
      %c4_35 = arith.constant 4 : index
      %c16_36 = arith.constant 16 : index
      %54 = vector.load %arg11[%c4_35, %c16_36] : memref<24x64xf32, #tpu.memory_space<vmem>>, vector<4x8xf32>
      tpu.vector_store %arg11[%c4_35, %c16_36], %53 {strides = array<i32>} : memref<24x64xf32, #tpu.memory_space<vmem>>, vector<4x8xf32>,
      %55 = vector.extract_strided_slice %21 {offsets = [0, 3, 8], sizes = [4, 1, 8], strides = [1, 1, 1]} : vector<4x8x16xf32> to vector<4x1x8xf32>
      %56 = vector.shape_cast %55 : vector<4x1x8xf32> to vector<4x8xf32>
      %c4_37 = arith.constant 4 : index
      %c24_38 = arith.constant 24 : index
      %57 = vector.load %arg11[%c4_37, %c24_38] : memref<24x64xf32, #tpu.memory_space<vmem>>, vector<4x8xf32>
      tpu.vector_store %arg11[%c4_37, %c24_38], %56 {strides = array<i32>} : memref<24x64xf32, #tpu.memory_space<vmem>>, vector<4x8xf32>,
      %58 = vector.extract_strided_slice %21 {offsets = [0, 4, 8], sizes = [4, 1, 8], strides = [1, 1, 1]} : vector<4x8x16xf32> to vector<4x1x8xf32>
      %59 = vector.shape_cast %58 : vector<4x1x8xf32> to vector<4x8xf32>
      %c4_39 = arith.constant 4 : index
      %c32_40 = arith.constant 32 : index
      %60 = vector.load %arg11[%c4_39, %c32_40] : memref<24x64xf32, #tpu.memory_space<vmem>>, vector<4x8xf32>
      tpu.vector_store %arg11[%c4_39, %c32_40], %59 {strides = array<i32>} : memref<24x64xf32, #tpu.memory_space<vmem>>, vector<4x8xf32>,
      %61 = vector.extract_strided_slice %21 {offsets = [0, 5, 8], sizes = [4, 1, 8], strides = [1, 1, 1]} : vector<4x8x16xf32> to vector<4x1x8xf32>
      %62 = vector.shape_cast %61 : vector<4x1x8xf32> to vector<4x8xf32>
      %c4_41 = arith.constant 4 : index
      %c40_42 = arith.constant 40 : index
      %63 = vector.load %arg11[%c4_41, %c40_42] : memref<24x64xf32, #tpu.memory_space<vmem>>, vector<4x8xf32>
      tpu.vector_store %arg11[%c4_41, %c40_42], %62 {strides = array<i32>} : memref<24x64xf32, #tpu.memory_space<vmem>>, vector<4x8xf32>,
      %64 = vector.extract_strided_slice %21 {offsets = [0, 6, 8], sizes = [4, 1, 8], strides = [1, 1, 1]} : vector<4x8x16xf32> to vector<4x1x8xf32>
      %65 = vector.shape_cast %64 : vector<4x1x8xf32> to vector<4x8xf32>
      %c4_43 = arith.constant 4 : index
      %c48_44 = arith.constant 48 : index
      %66 = vector.load %arg11[%c4_43, %c48_44] : memref<24x64xf32, #tpu.memory_space<vmem>>, vector<4x8xf32>
      tpu.vector_store %arg11[%c4_43, %c48_44], %65 {strides = array<i32>} : memref<24x64xf32, #tpu.memory_space<vmem>>, vector<4x8xf32>,
      %67 = vector.extract_strided_slice %21 {offsets = [0, 7, 8], sizes = [4, 1, 8], strides = [1, 1, 1]} : vector<4x8x16xf32> to vector<4x1x8xf32>
      %68 = vector.shape_cast %67 : vector<4x1x8xf32> to vector<4x8xf32>
      %c4_45 = arith.constant 4 : index
      %c56_46 = arith.constant 56 : index
      %69 = vector.load %arg11[%c4_45, %c56_46] : memref<24x64xf32, #tpu.memory_space<vmem>>, vector<4x8xf32>
      tpu.vector_store %arg11[%c4_45, %c56_46], %68 {strides = array<i32>} : memref<24x64xf32, #tpu.memory_space<vmem>>, vector<4x8xf32>,
      %c0_47 = arith.constant 0 : index
      %c0_48 = arith.constant 0 : index
      %c0_49 = arith.constant 0 : index
      %c16_50 = arith.constant 16 : index
      %70 = vector.load %arg2[%c0_47, %c0_48, %c0_49, %c16_50] : memref<1x4x8x32xf32, #tpu.memory_space<vmem>>, vector<1x4x8x16xf32>
      %71 = vector.shape_cast %70 : vector<1x4x8x16xf32> to vector<4x8x16xf32>
      %72 = vector.shape_cast %71 : vector<4x8x16xf32> to vector<32x16xf32>
      %c0_51 = arith.constant 0 : index
      %c0_52 = arith.constant 0 : index
      %73 = vector.load %arg7[%c0_51, %c0_52] : memref<16x16xf32, #tpu.memory_space<vmem>>, vector<16x16xf32>
      %cst_53 = arith.constant dense<0.000000e+00> : vector<32x16xf32>
      %74 = tpu.matmul %72, %73, %cst_53 {dimension_numbers = #tpu.dot_dimension_numbers<[1], [0], [0], [1], [0, 0, 1, 1], [], []>} : vector<32x16xf32>, vector<16x16xf32>, vector<32x16xf32> -> vector<32x16xf32>
      %75 = vector.shape_cast %74 : vector<32x16xf32> to vector<4x8x16xf32>
      %76 = vector.extract_strided_slice %75 {offsets = [0, 0, 0], sizes = [4, 1, 8], strides = [1, 1, 1]} : vector<4x8x16xf32> to vector<4x1x8xf32>
      %77 = vector.shape_cast %76 : vector<4x1x8xf32> to vector<4x8xf32>
      %c8_54 = arith.constant 8 : index
      %c0_55 = arith.constant 0 : index
      %78 = vector.load %arg11[%c8_54, %c0_55] : memref<24x64xf32, #tpu.memory_space<vmem>>, vector<4x8xf32>
      tpu.vector_store %arg11[%c8_54, %c0_55], %77 {strides = array<i32>} : memref<24x64xf32, #tpu.memory_space<vmem>>, vector<4x8xf32>,
      %79 = vector.extract_strided_slice %75 {offsets = [0, 1, 0], sizes = [4, 1, 8], strides = [1, 1, 1]} : vector<4x8x16xf32> to vector<4x1x8xf32>
      %80 = vector.shape_cast %79 : vector<4x1x8xf32> to vector<4x8xf32>
      %c8_56 = arith.constant 8 : index
      %c8_57 = arith.constant 8 : index
      %81 = vector.load %arg11[%c8_56, %c8_57] : memref<24x64xf32, #tpu.memory_space<vmem>>, vector<4x8xf32>
      tpu.vector_store %arg11[%c8_56, %c8_57], %80 {strides = array<i32>} : memref<24x64xf32, #tpu.memory_space<vmem>>, vector<4x8xf32>,
      %82 = vector.extract_strided_slice %75 {offsets = [0, 2, 0], sizes = [4, 1, 8], strides = [1, 1, 1]} : vector<4x8x16xf32> to vector<4x1x8xf32>
      %83 = vector.shape_cast %82 : vector<4x1x8xf32> to vector<4x8xf32>
      %c8_58 = arith.constant 8 : index
      %c16_59 = arith.constant 16 : index
      %84 = vector.load %arg11[%c8_58, %c16_59] : memref<24x64xf32, #tpu.memory_space<vmem>>, vector<4x8xf32>
      tpu.vector_store %arg11[%c8_58, %c16_59], %83 {strides = array<i32>} : memref<24x64xf32, #tpu.memory_space<vmem>>, vector<4x8xf32>,
      %85 = vector.extract_strided_slice %75 {offsets = [0, 3, 0], sizes = [4, 1, 8], strides = [1, 1, 1]} : vector<4x8x16xf32> to vector<4x1x8xf32>
      %86 = vector.shape_cast %85 : vector<4x1x8xf32> to vector<4x8xf32>
      %c8_60 = arith.constant 8 : index
      %c24_61 = arith.constant 24 : index
      %87 = vector.load %arg11[%c8_60, %c24_61] : memref<24x64xf32, #tpu.memory_space<vmem>>, vector<4x8xf32>
      tpu.vector_store %arg11[%c8_60, %c24_61], %86 {strides = array<i32>} : memref<24x64xf32, #tpu.memory_space<vmem>>, vector<4x8xf32>,
      %88 = vector.extract_strided_slice %75 {offsets = [0, 4, 0], sizes = [4, 1, 8], strides = [1, 1, 1]} : vector<4x8x16xf32> to vector<4x1x8xf32>
      %89 = vector.shape_cast %88 : vector<4x1x8xf32> to vector<4x8xf32>
      %c8_62 = arith.constant 8 : index
      %c32_63 = arith.constant 32 : index
      %90 = vector.load %arg11[%c8_62, %c32_63] : memref<24x64xf32, #tpu.memory_space<vmem>>, vector<4x8xf32>
      tpu.vector_store %arg11[%c8_62, %c32_63], %89 {strides = array<i32>} : memref<24x64xf32, #tpu.memory_space<vmem>>, vector<4x8xf32>,
      %91 = vector.extract_strided_slice %75 {offsets = [0, 5, 0], sizes = [4, 1, 8], strides = [1, 1, 1]} : vector<4x8x16xf32> to vector<4x1x8xf32>
      %92 = vector.shape_cast %91 : vector<4x1x8xf32> to vector<4x8xf32>
      %c8_64 = arith.constant 8 : index
      %c40_65 = arith.constant 40 : index
      %93 = vector.load %arg11[%c8_64, %c40_65] : memref<24x64xf32, #tpu.memory_space<vmem>>, vector<4x8xf32>
      tpu.vector_store %arg11[%c8_64, %c40_65], %92 {strides = array<i32>} : memref<24x64xf32, #tpu.memory_space<vmem>>, vector<4x8xf32>,
      %94 = vector.extract_strided_slice %75 {offsets = [0, 6, 0], sizes = [4, 1, 8], strides = [1, 1, 1]} : vector<4x8x16xf32> to vector<4x1x8xf32>
      %95 = vector.shape_cast %94 : vector<4x1x8xf32> to vector<4x8xf32>
      %c8_66 = arith.constant 8 : index
      %c48_67 = arith.constant 48 : index
      %96 = vector.load %arg11[%c8_66, %c48_67] : memref<24x64xf32, #tpu.memory_space<vmem>>, vector<4x8xf32>
      tpu.vector_store %arg11[%c8_66, %c48_67], %95 {strides = array<i32>} : memref<24x64xf32, #tpu.memory_space<vmem>>, vector<4x8xf32>,
      %97 = vector.extract_strided_slice %75 {offsets = [0, 7, 0], sizes = [4, 1, 8], strides = [1, 1, 1]} : vector<4x8x16xf32> to vector<4x1x8xf32>
      %98 = vector.shape_cast %97 : vector<4x1x8xf32> to vector<4x8xf32>
      %c8_68 = arith.constant 8 : index
      %c56_69 = arith.constant 56 : index
      %99 = vector.load %arg11[%c8_68, %c56_69] : memref<24x64xf32, #tpu.memory_space<vmem>>, vector<4x8xf32>
      tpu.vector_store %arg11[%c8_68, %c56_69], %98 {strides = array<i32>} : memref<24x64xf32, #tpu.memory_space<vmem>>, vector<4x8xf32>,
      %100 = vector.extract_strided_slice %75 {offsets = [0, 0, 8], sizes = [4, 1, 8], strides = [1, 1, 1]} : vector<4x8x16xf32> to vector<4x1x8xf32>
      %101 = vector.shape_cast %100 : vector<4x1x8xf32> to vector<4x8xf32>
      %c12 = arith.constant 12 : index
      %c0_70 = arith.constant 0 : index
      %102 = vector.load %arg11[%c12, %c0_70] : memref<24x64xf32, #tpu.memory_space<vmem>>, vector<4x8xf32>
      tpu.vector_store %arg11[%c12, %c0_70], %101 {strides = array<i32>} : memref<24x64xf32, #tpu.memory_space<vmem>>, vector<4x8xf32>,
      %103 = vector.extract_strided_slice %75 {offsets = [0, 1, 8], sizes = [4, 1, 8], strides = [1, 1, 1]} : vector<4x8x16xf32> to vector<4x1x8xf32>
      %104 = vector.shape_cast %103 : vector<4x1x8xf32> to vector<4x8xf32>
      %c12_71 = arith.constant 12 : index
      %c8_72 = arith.constant 8 : index
      %105 = vector.load %arg11[%c12_71, %c8_72] : memref<24x64xf32, #tpu.memory_space<vmem>>, vector<4x8xf32>
      tpu.vector_store %arg11[%c12_71, %c8_72], %104 {strides = array<i32>} : memref<24x64xf32, #tpu.memory_space<vmem>>, vector<4x8xf32>,
      %106 = vector.extract_strided_slice %75 {offsets = [0, 2, 8], sizes = [4, 1, 8], strides = [1, 1, 1]} : vector<4x8x16xf32> to vector<4x1x8xf32>
      %107 = vector.shape_cast %106 : vector<4x1x8xf32> to vector<4x8xf32>
      %c12_73 = arith.constant 12 : index
      %c16_74 = arith.constant 16 : index
      %108 = vector.load %arg11[%c12_73, %c16_74] : memref<24x64xf32, #tpu.memory_space<vmem>>, vector<4x8xf32>
      tpu.vector_store %arg11[%c12_73, %c16_74], %107 {strides = array<i32>} : memref<24x64xf32, #tpu.memory_space<vmem>>, vector<4x8xf32>,
      %109 = vector.extract_strided_slice %75 {offsets = [0, 3, 8], sizes = [4, 1, 8], strides = [1, 1, 1]} : vector<4x8x16xf32> to vector<4x1x8xf32>
      %110 = vector.shape_cast %109 : vector<4x1x8xf32> to vector<4x8xf32>
      %c12_75 = arith.constant 12 : index
      %c24_76 = arith.constant 24 : index
      %111 = vector.load %arg11[%c12_75, %c24_76] : memref<24x64xf32, #tpu.memory_space<vmem>>, vector<4x8xf32>
      tpu.vector_store %arg11[%c12_75, %c24_76], %110 {strides = array<i32>} : memref<24x64xf32, #tpu.memory_space<vmem>>, vector<4x8xf32>,
      %112 = vector.extract_strided_slice %75 {offsets = [0, 4, 8], sizes = [4, 1, 8], strides = [1, 1, 1]} : vector<4x8x16xf32> to vector<4x1x8xf32>
      %113 = vector.shape_cast %112 : vector<4x1x8xf32> to vector<4x8xf32>
      %c12_77 = arith.constant 12 : index
      %c32_78 = arith.constant 32 : index
      %114 = vector.load %arg11[%c12_77, %c32_78] : memref<24x64xf32, #tpu.memory_space<vmem>>, vector<4x8xf32>
      tpu.vector_store %arg11[%c12_77, %c32_78], %113 {strides = array<i32>} : memref<24x64xf32, #tpu.memory_space<vmem>>, vector<4x8xf32>,
      %115 = vector.extract_strided_slice %75 {offsets = [0, 5, 8], sizes = [4, 1, 8], strides = [1, 1, 1]} : vector<4x8x16xf32> to vector<4x1x8xf32>
      %116 = vector.shape_cast %115 : vector<4x1x8xf32> to vector<4x8xf32>
      %c12_79 = arith.constant 12 : index
      %c40_80 = arith.constant 40 : index
      %117 = vector.load %arg11[%c12_79, %c40_80] : memref<24x64xf32, #tpu.memory_space<vmem>>, vector<4x8xf32>
      tpu.vector_store %arg11[%c12_79, %c40_80], %116 {strides = array<i32>} : memref<24x64xf32, #tpu.memory_space<vmem>>, vector<4x8xf32>,
      %118 = vector.extract_strided_slice %75 {offsets = [0, 6, 8], sizes = [4, 1, 8], strides = [1, 1, 1]} : vector<4x8x16xf32> to vector<4x1x8xf32>
      %119 = vector.shape_cast %118 : vector<4x1x8xf32> to vector<4x8xf32>
      %c12_81 = arith.constant 12 : index
      %c48_82 = arith.constant 48 : index
      %120 = vector.load %arg11[%c12_81, %c48_82] : memref<24x64xf32, #tpu.memory_space<vmem>>, vector<4x8xf32>
      tpu.vector_store %arg11[%c12_81, %c48_82], %119 {strides = array<i32>} : memref<24x64xf32, #tpu.memory_space<vmem>>, vector<4x8xf32>,
      %121 = vector.extract_strided_slice %75 {offsets = [0, 7, 8], sizes = [4, 1, 8], strides = [1, 1, 1]} : vector<4x8x16xf32> to vector<4x1x8xf32>
      %122 = vector.shape_cast %121 : vector<4x1x8xf32> to vector<4x8xf32>
      %c12_83 = arith.constant 12 : index
      %c56_84 = arith.constant 56 : index
      %123 = vector.load %arg11[%c12_83, %c56_84] : memref<24x64xf32, #tpu.memory_space<vmem>>, vector<4x8xf32>
      tpu.vector_store %arg11[%c12_83, %c56_84], %122 {strides = array<i32>} : memref<24x64xf32, #tpu.memory_space<vmem>>, vector<4x8xf32>,
      %c0_85 = arith.constant 0 : index
      %c0_86 = arith.constant 0 : index
      %c0_87 = arith.constant 0 : index
      %124 = vector.load %arg4[%c0_85, %c0_86, %c0_87] : memref<1x8x64xf32, #tpu.memory_space<vmem>>, vector<1x8x64xf32>
      %125 = vector.shape_cast %124 : vector<1x8x64xf32> to vector<8x64xf32>
      %c16_88 = arith.constant 16 : index
      %c0_89 = arith.constant 0 : index
      %126 = vector.load %arg11[%c16_88, %c0_89] : memref<24x64xf32, #tpu.memory_space<vmem>>, vector<8x64xf32>
      tpu.vector_store %arg11[%c16_88, %c0_89], %125 {strides = array<i32>} : memref<24x64xf32, #tpu.memory_space<vmem>>, vector<8x64xf32>,
      %c0_90 = arith.constant 0 : index
      %c0_91 = arith.constant 0 : index
      %127 = vector.load %arg5[%c0_90, %c0_91] : memref<4x25xf32, #tpu.memory_space<vmem>>, vector<4x24xf32>
      %c0_92 = arith.constant 0 : index
      %c0_93 = arith.constant 0 : index
      %128 = vector.load %arg11[%c0_92, %c0_93] : memref<24x64xf32, #tpu.memory_space<vmem>>, vector<24x64xf32>
      %cst_94 = arith.constant dense<0.000000e+00> : vector<4x64xf32>
      %129 = tpu.matmul %127, %128, %cst_94 {dimension_numbers = #tpu.dot_dimension_numbers<[1], [0], [0], [1], [0, 0, 1, 1], [], []>} : vector<4x24xf32>, vector<24x64xf32>, vector<4x64xf32> -> vector<4x64xf32>
      %c0_95 = arith.constant 0 : index
      %c24_96 = arith.constant 24 : index
      %130 = vector.load %arg5[%c0_95, %c24_96] : memref<4x25xf32, #tpu.memory_space<vmem>>, vector<4x1xf32>
      %131 = vector.broadcast %130 : vector<4x1xf32> to vector<4x64xf32>
      %132 = arith.addf %129, %131 : vector<4x64xf32>
      %cst_97 = arith.constant 0.000000e+00 : f32
      %133 = vector.broadcast %cst_97 : f32 to vector<4x64xf32>
      %134 = arith.maximumf %132, %133 : vector<4x64xf32>
      %c0_98 = arith.constant 0 : index
      %c0_99 = arith.constant 0 : index
      %135 = vector.load %arg6[%c0_98, %c0_99] : memref<4x5xf32, #tpu.memory_space<vmem>>, vector<4x4xf32>
      %cst_100 = arith.constant dense<0.000000e+00> : vector<4x64xf32>
      %136 = tpu.matmul %135, %134, %cst_100 {dimension_numbers = #tpu.dot_dimension_numbers<[1], [0], [0], [1], [0, 0, 1, 1], [], []>} : vector<4x4xf32>, vector<4x64xf32>, vector<4x64xf32> -> vector<4x64xf32>
      %c0_101 = arith.constant 0 : index
      %c4_102 = arith.constant 4 : index
      %137 = vector.load %arg6[%c0_101, %c4_102] : memref<4x5xf32, #tpu.memory_space<vmem>>, vector<4x1xf32>
      %138 = vector.broadcast %137 : vector<4x1xf32> to vector<4x64xf32>
      %139 = arith.addf %136, %138 : vector<4x64xf32>
      %140 = arith.negf %139 : vector<4x64xf32>
      %141 = math.exp %140 : vector<4x64xf32>
      %cst_103 = arith.constant 1.000000e+00 : f32
      %142 = vector.broadcast %cst_103 : f32 to vector<4x64xf32>
      %143 = arith.addf %142, %141 : vector<4x64xf32>
      %144 = arith.divf %142, %143 : vector<4x64xf32>
      %145 = vector.extract_strided_slice %144 {offsets = [0, 0], sizes = [4, 8], strides = [1, 1]} : vector<4x64xf32> to vector<4x8xf32>
      %c0_104 = arith.constant 0 : index
      %c0_105 = arith.constant 0 : index
      %c0_106 = arith.constant 0 : index
      %146 = vector.load %arg12[%c0_104, %c0_105, %c0_106] : memref<4x8x8xf32, #tpu.memory_space<vmem>>, vector<4x1x8xf32>
      %147 = vector.shape_cast %146 : vector<4x1x8xf32> to vector<4x8xf32>
      %148 = vector.shape_cast %145 : vector<4x8xf32> to vector<4x1x8xf32>
      tpu.vector_store %arg12[%c0_104, %c0_105, %c0_106], %148 {strides = array<i32>} : memref<4x8x8xf32, #tpu.memory_space<vmem>>, vector<4x1x8xf32>,
      %149 = vector.extract_strided_slice %144 {offsets = [0, 8], sizes = [4, 8], strides = [1, 1]} : vector<4x64xf32> to vector<4x8xf32>
      %c0_107 = arith.constant 0 : index
      %c1 = arith.constant 1 : index
      %c0_108 = arith.constant 0 : index
      %150 = vector.load %arg12[%c0_107, %c1, %c0_108] : memref<4x8x8xf32, #tpu.memory_space<vmem>>, vector<4x1x8xf32>
      %151 = vector.shape_cast %150 : vector<4x1x8xf32> to vector<4x8xf32>
      %152 = vector.shape_cast %149 : vector<4x8xf32> to vector<4x1x8xf32>
      tpu.vector_store %arg12[%c0_107, %c1, %c0_108], %152 {strides = array<i32>} : memref<4x8x8xf32, #tpu.memory_space<vmem>>, vector<4x1x8xf32>,
      %153 = vector.extract_strided_slice %144 {offsets = [0, 16], sizes = [4, 8], strides = [1, 1]} : vector<4x64xf32> to vector<4x8xf32>
      %c0_109 = arith.constant 0 : index
      %c2 = arith.constant 2 : index
      %c0_110 = arith.constant 0 : index
      %154 = vector.load %arg12[%c0_109, %c2, %c0_110] : memref<4x8x8xf32, #tpu.memory_space<vmem>>, vector<4x1x8xf32>
      %155 = vector.shape_cast %154 : vector<4x1x8xf32> to vector<4x8xf32>
      %156 = vector.shape_cast %153 : vector<4x8xf32> to vector<4x1x8xf32>
      tpu.vector_store %arg12[%c0_109, %c2, %c0_110], %156 {strides = array<i32>} : memref<4x8x8xf32, #tpu.memory_space<vmem>>, vector<4x1x8xf32>,
      %157 = vector.extract_strided_slice %144 {offsets = [0, 24], sizes = [4, 8], strides = [1, 1]} : vector<4x64xf32> to vector<4x8xf32>
      %c0_111 = arith.constant 0 : index
      %c3 = arith.constant 3 : index
      %c0_112 = arith.constant 0 : index
      %158 = vector.load %arg12[%c0_111, %c3, %c0_112] : memref<4x8x8xf32, #tpu.memory_space<vmem>>, vector<4x1x8xf32>
      %159 = vector.shape_cast %158 : vector<4x1x8xf32> to vector<4x8xf32>
      %160 = vector.shape_cast %157 : vector<4x8xf32> to vector<4x1x8xf32>
      tpu.vector_store %arg12[%c0_111, %c3, %c0_112], %160 {strides = array<i32>} : memref<4x8x8xf32, #tpu.memory_space<vmem>>, vector<4x1x8xf32>,
      %161 = vector.extract_strided_slice %144 {offsets = [0, 32], sizes = [4, 8], strides = [1, 1]} : vector<4x64xf32> to vector<4x8xf32>
      %c0_113 = arith.constant 0 : index
      %c4_114 = arith.constant 4 : index
      %c0_115 = arith.constant 0 : index
      %162 = vector.load %arg12[%c0_113, %c4_114, %c0_115] : memref<4x8x8xf32, #tpu.memory_space<vmem>>, vector<4x1x8xf32>
      %163 = vector.shape_cast %162 : vector<4x1x8xf32> to vector<4x8xf32>
      %164 = vector.shape_cast %161 : vector<4x8xf32> to vector<4x1x8xf32>
      tpu.vector_store %arg12[%c0_113, %c4_114, %c0_115], %164 {strides = array<i32>} : memref<4x8x8xf32, #tpu.memory_space<vmem>>, vector<4x1x8xf32>,
      %165 = vector.extract_strided_slice %144 {offsets = [0, 40], sizes = [4, 8], strides = [1, 1]} : vector<4x64xf32> to vector<4x8xf32>
      %c0_116 = arith.constant 0 : index
      %c5 = arith.constant 5 : index
      %c0_117 = arith.constant 0 : index
      %166 = vector.load %arg12[%c0_116, %c5, %c0_117] : memref<4x8x8xf32, #tpu.memory_space<vmem>>, vector<4x1x8xf32>
      %167 = vector.shape_cast %166 : vector<4x1x8xf32> to vector<4x8xf32>
      %168 = vector.shape_cast %165 : vector<4x8xf32> to vector<4x1x8xf32>
      tpu.vector_store %arg12[%c0_116, %c5, %c0_117], %168 {strides = array<i32>} : memref<4x8x8xf32, #tpu.memory_space<vmem>>, vector<4x1x8xf32>,
      %169 = vector.extract_strided_slice %144 {offsets = [0, 48], sizes = [4, 8], strides = [1, 1]} : vector<4x64xf32> to vector<4x8xf32>
      %c0_118 = arith.constant 0 : index
      %c6 = arith.constant 6 : index
      %c0_119 = arith.constant 0 : index
      %170 = vector.load %arg12[%c0_118, %c6, %c0_119] : memref<4x8x8xf32, #tpu.memory_space<vmem>>, vector<4x1x8xf32>
      %171 = vector.shape_cast %170 : vector<4x1x8xf32> to vector<4x8xf32>
      %172 = vector.shape_cast %169 : vector<4x8xf32> to vector<4x1x8xf32>
      tpu.vector_store %arg12[%c0_118, %c6, %c0_119], %172 {strides = array<i32>} : memref<4x8x8xf32, #tpu.memory_space<vmem>>, vector<4x1x8xf32>,
      %173 = vector.extract_strided_slice %144 {offsets = [0, 56], sizes = [4, 8], strides = [1, 1]} : vector<4x64xf32> to vector<4x8xf32>
      %c0_120 = arith.constant 0 : index
      %c7 = arith.constant 7 : index
      %c0_121 = arith.constant 0 : index
      %174 = vector.load %arg12[%c0_120, %c7, %c0_121] : memref<4x8x8xf32, #tpu.memory_space<vmem>>, vector<4x1x8xf32>
      %175 = vector.shape_cast %174 : vector<4x1x8xf32> to vector<4x8xf32>
      %176 = vector.shape_cast %173 : vector<4x8xf32> to vector<4x1x8xf32>
      tpu.vector_store %arg12[%c0_120, %c7, %c0_121], %176 {strides = array<i32>} : memref<4x8x8xf32, #tpu.memory_space<vmem>>, vector<4x1x8xf32>,
    } else {
    }
    %c0 = arith.constant 0 : index
    %c0_1 = arith.constant 0 : index
    %c0_2 = arith.constant 0 : index
    %c0_3 = arith.constant 0 : index
    %3 = vector.load %arg3[%c0, %c0_1, %c0_2, %c0_3] : memref<1x1x16x16xf32, #tpu.memory_space<vmem>>, vector<1x1x16x16xf32>
    %4 = vector.shape_cast %3 : vector<1x1x16x16xf32> to vector<16x16xf32>
    %5 = arith.index_cast %arg1 : i32 to index
    %c0_4 = arith.constant 0 : index
    %c0_5 = arith.constant 0 : index
    %6 = vector.load %arg12[%5, %c0_4, %c0_5] : memref<4x8x8xf32, #tpu.memory_space<vmem>>, vector<1x8x8xf32>
    %7 = vector.shape_cast %6 : vector<1x8x8xf32> to vector<8x8xf32>
    %c0_6 = arith.constant 0 : index
    %c0_7 = arith.constant 0 : index
    %8 = vector.load %arg8[%c0_6, %c0_7] : memref<16x8xf32, #tpu.memory_space<vmem>>, vector<16x8xf32>
    %cst = arith.constant dense<0.000000e+00> : vector<16x8xf32>
    %9 = tpu.matmul %4, %8, %cst {dimension_numbers = #tpu.dot_dimension_numbers<[1], [0], [0], [1], [0, 0, 1, 1], [], []>} : vector<16x16xf32>, vector<16x8xf32>, vector<16x8xf32> -> vector<16x8xf32>
    %cst_8 = arith.constant dense<0.000000e+00> : vector<16x8xf32>
    %10 = tpu.matmul %9, %7, %cst_8 {dimension_numbers = #tpu.dot_dimension_numbers<[1], [0], [0], [1], [0, 0, 1, 1], [], []>} : vector<16x8xf32>, vector<8x8xf32>, vector<16x8xf32> -> vector<16x8xf32>
    %c0_9 = arith.constant 0 : index
    %c0_10 = arith.constant 0 : index
    %11 = vector.load %arg9[%c0_9, %c0_10] : memref<8x16xf32, #tpu.memory_space<vmem>>, vector<8x16xf32>
    %cst_11 = arith.constant dense<0.000000e+00> : vector<16x16xf32>
    %12 = tpu.matmul %10, %11, %cst_11 {dimension_numbers = #tpu.dot_dimension_numbers<[1], [0], [0], [1], [0, 0, 1, 1], [], []>} : vector<16x8xf32>, vector<8x16xf32>, vector<16x16xf32> -> vector<16x16xf32>
    %c0_12 = arith.constant 0 : index
    %c0_13 = arith.constant 0 : index
    %c0_14 = arith.constant 0 : index
    %c0_15 = arith.constant 0 : index
    %13 = vector.load %arg10[%c0_12, %c0_13, %c0_14, %c0_15] : memref<1x1x16x16xf32, #tpu.memory_space<vmem>>, vector<1x1x16x16xf32>
    %14 = vector.shape_cast %13 : vector<1x1x16x16xf32> to vector<16x16xf32>
    %15 = vector.shape_cast %12 : vector<16x16xf32> to vector<1x1x16x16xf32>
    tpu.vector_store %arg10[%c0_12, %c0_13, %c0_14, %c0_15], %15 {strides = array<i32>} : memref<1x1x16x16xf32, #tpu.memory_space<vmem>>, vector<1x1x16x16xf32>,
    return
  }
  func.func @transform_0(%arg0: i32, %arg1: i32) -> (i32, i32, i32, i32) {
    %c0_i32 = arith.constant 0 : i32
    %c0_i32_0 = arith.constant 0 : i32
    %c0_i32_1 = arith.constant 0 : i32
    %c0_i32_2 = arith.constant 0 : i32
    return %arg0, %c0_i32, %c0_i32_0, %c0_i32_1 : i32, i32, i32, i32
  }
  func.func @transform_1(%arg0: i32, %arg1: i32) -> (i32, i32, i32, i32) {
    %c0_i32 = arith.constant 0 : i32
    %c0_i32_0 = arith.constant 0 : i32
    %c0_i32_1 = arith.constant 0 : i32
    return %arg0, %arg1, %c0_i32, %c0_i32_0 : i32, i32, i32, i32
  }
  func.func @transform_2(%arg0: i32, %arg1: i32) -> (i32, i32, i32) {
    %c0_i32 = arith.constant 0 : i32
    %c0_i32_0 = arith.constant 0 : i32
    %c0_i32_1 = arith.constant 0 : i32
    return %arg0, %c0_i32, %c0_i32_0 : i32, i32, i32
  }
  func.func @transform_3(%arg0: i32, %arg1: i32) -> (i32, i32) {
    %c0_i32 = arith.constant 0 : i32
    %c0_i32_0 = arith.constant 0 : i32
    %c0_i32_1 = arith.constant 0 : i32
    return %c0_i32, %c0_i32_0 : i32, i32
  }
  func.func @transform_4(%arg0: i32, %arg1: i32) -> (i32, i32) {
    %c0_i32 = arith.constant 0 : i32
    %c0_i32_0 = arith.constant 0 : i32
    %c0_i32_1 = arith.constant 0 : i32
    return %c0_i32, %c0_i32_0 : i32, i32
  }
  func.func @transform_5(%arg0: i32, %arg1: i32) -> (i32, i32) {
    %c0_i32 = arith.constant 0 : i32
    %c0_i32_0 = arith.constant 0 : i32
    %c0_i32_1 = arith.constant 0 : i32
    return %c0_i32, %c0_i32_0 : i32, i32
  }
  func.func @transform_6(%arg0: i32, %arg1: i32) -> (i32, i32) {
    %c0_i32 = arith.constant 0 : i32
    %c0_i32_0 = arith.constant 0 : i32
    %c0_i32_1 = arith.constant 0 : i32
    return %c0_i32, %c0_i32_0 : i32, i32
  }
  func.func @transform_7(%arg0: i32, %arg1: i32) -> (i32, i32) {
    %c0_i32 = arith.constant 0 : i32
    %c0_i32_0 = arith.constant 0 : i32
    %c0_i32_1 = arith.constant 0 : i32
    return %c0_i32, %c0_i32_0 : i32, i32
  }
  func.func @transform_8(%arg0: i32, %arg1: i32) -> (i32, i32, i32, i32) {
    %c0_i32 = arith.constant 0 : i32
    %c0_i32_0 = arith.constant 0 : i32
    %c0_i32_1 = arith.constant 0 : i32
    return %arg0, %arg1, %c0_i32, %c0_i32_0 : i32, i32, i32, i32
  }
}

</mosaic_0001>

<llo_original>
// kernel: forward.1
$region0: #{forward.1}
  #allocation0 [shape = 'u32[]', space=smem, size = 0x4, offset = 0x4, fixed_abs, tag = 'smem constant byte address 0x4 - core index']
  #allocation1 [shape = 'u32[72,128]{1,0:T(1,128)}', space=vmem, size = 0x9000, scoped, tag = 'internal scratch']
  #allocation2 [shape = 'f32[24,64]{1,0:T(8,128)}', space=vmem, size = 0x3000, scoped, tag = 'scratch operand']
  #allocation3 [shape = 'f32[4,8,8]{2,1,0:T(8,128)}', space=vmem, size = 0x4000, scoped, tag = 'scratch operand']
  %s0 = inlined_call_operand.vmem [shape: f32[2,4,8,32], index: 0, kind: input, shape index: {}]
  %s1 = inlined_call_operand.vmem [shape: f32[2,4,16,16], index: 1, kind: input, shape index: {}]
  %s2 = inlined_call_operand.vmem [shape: f32[2,8,64], index: 2, kind: input, shape index: {}]
  %s3 = inlined_call_operand.vmem [shape: f32[4,25], index: 3, kind: input, shape index: {}]
  %s4 = inlined_call_operand.vmem [shape: f32[4,5], index: 4, kind: input, shape index: {}]
  %s5 = inlined_call_operand.vmem [shape: f32[16,16], index: 5, kind: input, shape index: {}]
  %s6 = inlined_call_operand.vmem [shape: f32[16,8], index: 6, kind: input, shape index: {}]
  %s7 = inlined_call_operand.vmem [shape: f32[8,16], index: 7, kind: input, shape index: {}]
  %s8 = inlined_call_operand.hbm [shape: f32[2,4,16,16], index: 8, kind: output, shape index: {}]
  %s9 = sld [smem:[#allocation0]]
  $region69: #{forward.1} parent=0
    _
  %s11 = ssub.s32 1, %s9
  %s12 = scalar_select 0, %s11, %s9
  $region1: #{forward.1} parent=0
    #allocation4 [shape = 'u8[16384]{0}', space=vmem, size = 0x4000, scoped, tag = 'output window, operand 0']
    #allocation5 [shape = 's32[2]{0}', space=sflag, size = 0x8, scoped, tag = 'scoped memory for forward.1']
    %13 = vsyncpa [#allocation5], 0
    %s14 = scalar_lea.sflag [#allocation5], 1
    %15 = vsyncpa %s14, 0
    loop: start=0, step=1, limit=10
    $region2: #{forward.1} parent=1 // loop_pre_header
      _
    $region3: #{forward.1} parent=1 // loop_header
      %s17 = sphi 0, %s21
      %p18 = scmp.ge.s32.totalorder %s17, 10
      %s24 = sphi 0, %s36
      %s25 = sphi 0, %s32
      %s26 = sphi 0, %s24
      %s27 = sphi 0, %s25
      %s28 = sphi 0, %s26
      %s29 = sphi 0, %s27
      %s39 = sphi 0, %s41
      %s42 = sphi 0, %s39
      %s43 = sphi 0, %s42
      %s59 = sphi 0, %s43
      %s67 = sphi 0, %s69
      %s70 = sphi 0, %s67
      %s71 = sphi 0, %s70
      %s87 = sphi 0, %s71
      %s93 = sphi 0, %s95
      %s96 = sphi 0, %s93
      %s97 = sphi 0, %s96
      %s113 = sphi 0, %s97
      %s117 = sphi 0, %s117
      %s119 = sphi 0, %s117
      %s120 = sphi 0, %s119
      %s134 = sphi 0, %s120
      %s138 = sphi 0, %s138
      %s140 = sphi 0, %s138
      %s141 = sphi 0, %s140
      %s155 = sphi 0, %s141
      %s159 = sphi 0, %s159
      %s161 = sphi 0, %s159
      %s162 = sphi 0, %s161
      %s176 = sphi 0, %s162
      %s180 = sphi 0, %s180
      %s182 = sphi 0, %s180
      %s183 = sphi 0, %s182
      %s197 = sphi 0, %s183
      %s201 = sphi 0, %s201
      %s203 = sphi 0, %s201
      %s204 = sphi 0, %s203
      %s218 = sphi 0, %s204
      %s226 = sphi 0, %s228
      %s229 = sphi 0, %s226
      %s230 = sphi 0, %s229
      %s246 = sphi 0, %s230
    $region4: #{forward.1} parent=1 // loop_header_branch
      %20 = sbr.rel (%p18) target = $region8
    $region5: #{forward.1} parent=1 // loop_body
      %s22 = ssub.s32 %s17, 1
      %s23 = ssub.s32 %s17, 2
      %s30 = sadd.s32 1, %s25
      %p31 = scmp.ge.s32.totalorder %s30, 4
      %s32 = scalar_select %p31, 0, %s30
      %s33 = sadd.s32 1, %s24
      %s34 = scalar_select %p31, %s33, %s24
      %p35 = scmp.ge.s32.totalorder %s34, 2
      %s36 = scalar_select %p35, 0, %s34
      %s37 = ssub.s32 %s24, %s36
      %p38 = scmp.eq.s32.totalorder %s37, 0
      %s40 = sadd.s32 %s39, 1
      %s41 = scalar_select %p38, %s39, %s40
      %p44 = pneg %p38
      %p45 = scmp.eq.s32.totalorder %s17, 7
      %p46 = por %p44, %p45
      %p47 = scmp.ne.s32.totalorder %s39, %s42
      %p48 = scmp.eq.s32.totalorder %s17, 0
      %p49 = por %p47, %p48
      %p50 = scmp.ne.s32.totalorder %s39, %s42
      %p51 = scmp.eq.s32.totalorder %s22, 7
      %p52 = por %p50, %p51
      %p53 = scmp.ne.s32.totalorder %s42, %s43
      %p54 = scmp.eq.s32.totalorder %s22, 0
      %p55 = por %p53, %p54
      %p56 = scmp.ne.s32.totalorder %s42, %s43
      %p57 = scmp.eq.s32.totalorder %s23, 7
      %p58 = por %p56, %p57
      %p60 = scmp.ne.s32.totalorder %s43, %s59
      %p61 = scmp.eq.s32.totalorder %s23, 0
      %p62 = por %p60, %p61
      %s63 = ssub.s32 %s24, %s36
      %s64 = ssub.s32 %s25, %s32
      %s65 = sor.u32 %s63, %s64
      %p66 = scmp.eq.s32.totalorder %s65, 0
      %s68 = sadd.s32 %s67, 1
      %s69 = scalar_select %p66, %s67, %s68
      %p72 = pneg %p66
      %p73 = scmp.eq.s32.totalorder %s17, 7
      %p74 = por %p72, %p73
      %p75 = scmp.ne.s32.totalorder %s67, %s70
      %p76 = scmp.eq.s32.totalorder %s17, 0
      %p77 = por %p75, %p76
      %p78 = scmp.ne.s32.totalorder %s67, %s70
      %p79 = scmp.eq.s32.totalorder %s22, 7
      %p80 = por %p78, %p79
      %p81 = scmp.ne.s32.totalorder %s70, %s71
      %p82 = scmp.eq.s32.totalorder %s22, 0
      %p83 = por %p81, %p82
      %p84 = scmp.ne.s32.totalorder %s70, %s71
      %p85 = scmp.eq.s32.totalorder %s23, 7
      %p86 = por %p84, %p85
      %p88 = scmp.ne.s32.totalorder %s71, %s87
      %p89 = scmp.eq.s32.totalorder %s23, 0
      %p90 = por %p88, %p89
      %s91 = ssub.s32 %s24, %s36
      %p92 = scmp.eq.s32.totalorder %s91, 0
      %s94 = sadd.s32 %s93, 1
      %s95 = scalar_select %p92, %s93, %s94
      %p98 = pneg %p92
      %p99 = scmp.eq.s32.totalorder %s17, 7
      %p100 = por %p98, %p99
      %p101 = scmp.ne.s32.totalorder %s93, %s96
      %p102 = scmp.eq.s32.totalorder %s17, 0
      %p103 = por %p101, %p102
      %p104 = scmp.ne.s32.totalorder %s93, %s96
      %p105 = scmp.eq.s32.totalorder %s22, 7
      %p106 = por %p104, %p105
      %p107 = scmp.ne.s32.totalorder %s96, %s97
      %p108 = scmp.eq.s32.totalorder %s22, 0
      %p109 = por %p107, %p108
      %p110 = scmp.ne.s32.totalorder %s96, %s97
      %p111 = scmp.eq.s32.totalorder %s23, 7
      %p112 = por %p110, %p111
      %p114 = scmp.ne.s32.totalorder %s97, %s113
      %p115 = scmp.eq.s32.totalorder %s23, 0
      %p116 = por %p114, %p115
      %s118 = sadd.s32 %s117, 1
      %p121 = scmp.eq.s32.totalorder %s17, 7
      %p122 = scmp.ne.s32.totalorder %s117, %s119
      %p123 = scmp.eq.s32.totalorder %s17, 0
      %p124 = por %p122, %p123
      %p125 = scmp.ne.s32.totalorder %s117, %s119
      %p126 = scmp.eq.s32.totalorder %s22, 7
      %p127 = por %p125, %p126
      %p128 = scmp.ne.s32.totalorder %s119, %s120
      %p129 = scmp.eq.s32.totalorder %s22, 0
      %p130 = por %p128, %p129
      %p131 = scmp.ne.s32.totalorder %s119, %s120
      %p132 = scmp.eq.s32.totalorder %s23, 7
      %p133 = por %p131, %p132
      %p135 = scmp.ne.s32.totalorder %s120, %s134
      %p136 = scmp.eq.s32.totalorder %s23, 0
      %p137 = por %p135, %p136
      %s139 = sadd.s32 %s138, 1
      %p142 = scmp.eq.s32.totalorder %s17, 7
      %p143 = scmp.ne.s32.totalorder %s138, %s140
      %p144 = scmp.eq.s32.totalorder %s17, 0
      %p145 = por %p143, %p144
      %p146 = scmp.ne.s32.totalorder %s138, %s140
      %p147 = scmp.eq.s32.totalorder %s22, 7
      %p148 = por %p146, %p147
      %p149 = scmp.ne.s32.totalorder %s140, %s141
      %p150 = scmp.eq.s32.totalorder %s22, 0
      %p151 = por %p149, %p150
      %p152 = scmp.ne.s32.totalorder %s140, %s141
      %p153 = scmp.eq.s32.totalorder %s23, 7
      %p154 = por %p152, %p153
      %p156 = scmp.ne.s32.totalorder %s141, %s155
      %p157 = scmp.eq.s32.totalorder %s23, 0
      %p158 = por %p156, %p157
      %s160 = sadd.s32 %s159, 1
      %p163 = scmp.eq.s32.totalorder %s17, 7
      %p164 = scmp.ne.s32.totalorder %s159, %s161
      %p165 = scmp.eq.s32.totalorder %s17, 0
      %p166 = por %p164, %p165
      %p167 = scmp.ne.s32.totalorder %s159, %s161
      %p168 = scmp.eq.s32.totalorder %s22, 7
      %p169 = por %p167, %p168
      %p170 = scmp.ne.s32.totalorder %s161, %s162
      %p171 = scmp.eq.s32.totalorder %s22, 0
      %p172 = por %p170, %p171
      %p173 = scmp.ne.s32.totalorder %s161, %s162
      %p174 = scmp.eq.s32.totalorder %s23, 7
      %p175 = por %p173, %p174
      %p177 = scmp.ne.s32.totalorder %s162, %s176
      %p178 = scmp.eq.s32.totalorder %s23, 0
      %p179 = por %p177, %p178
      %s181 = sadd.s32 %s180, 1
      %p184 = scmp.eq.s32.totalorder %s17, 7
      %p185 = scmp.ne.s32.totalorder %s180, %s182
      %p186 = scmp.eq.s32.totalorder %s17, 0
      %p187 = por %p185, %p186
      %p188 = scmp.ne.s32.totalorder %s180, %s182
      %p189 = scmp.eq.s32.totalorder %s22, 7
      %p190 = por %p188, %p189
      %p191 = scmp.ne.s32.totalorder %s182, %s183
      %p192 = scmp.eq.s32.totalorder %s22, 0
      %p193 = por %p191, %p192
      %p194 = scmp.ne.s32.totalorder %s182, %s183
      %p195 = scmp.eq.s32.totalorder %s23, 7
      %p196 = por %p194, %p195
      %p198 = scmp.ne.s32.totalorder %s183, %s197
      %p199 = scmp.eq.s32.totalorder %s23, 0
      %p200 = por %p198, %p199
      %s202 = sadd.s32 %s201, 1
      %p205 = scmp.eq.s32.totalorder %s17, 7
      %p206 = scmp.ne.s32.totalorder %s201, %s203
      %p207 = scmp.eq.s32.totalorder %s17, 0
      %p208 = por %p206, %p207
      %p209 = scmp.ne.s32.totalorder %s201, %s203
      %p210 = scmp.eq.s32.totalorder %s22, 7
      %p211 = por %p209, %p210
      %p212 = scmp.ne.s32.totalorder %s203, %s204
      %p213 = scmp.eq.s32.totalorder %s22, 0
      %p214 = por %p212, %p213
      %p215 = scmp.ne.s32.totalorder %s203, %s204
      %p216 = scmp.eq.s32.totalorder %s23, 7
      %p217 = por %p215, %p216
      %p219 = scmp.ne.s32.totalorder %s204, %s218
      %p220 = scmp.eq.s32.totalorder %s23, 0
      %p221 = por %p219, %p220
      %s222 = ssub.s32 %s24, %s36
      %s223 = ssub.s32 %s25, %s32
      %s224 = sor.u32 %s222, %s223
      %p225 = scmp.eq.s32.totalorder %s224, 0
      %s227 = sadd.s32 %s226, 1
      %s228 = scalar_select %p225, %s226, %s227
      %p231 = pneg %p225
      %p232 = scmp.eq.s32.totalorder %s17, 7
      %p233 = por %p231, %p232
      %p234 = scmp.ne.s32.totalorder %s226, %s229
      %p235 = scmp.eq.s32.totalorder %s17, 0
      %p236 = por %p234, %p235
      %p237 = scmp.ne.s32.totalorder %s226, %s229
      %p238 = scmp.eq.s32.totalorder %s22, 7
      %p239 = por %p237, %p238
      %p240 = scmp.ne.s32.totalorder %s229, %s230
      %p241 = scmp.eq.s32.totalorder %s22, 0
      %p242 = por %p240, %p241
      %p243 = scmp.ne.s32.totalorder %s229, %s230
      %p244 = scmp.eq.s32.totalorder %s23, 7
      %p245 = por %p243, %p244
      %p247 = scmp.ne.s32.totalorder %s230, %s246
      %p248 = scmp.eq.s32.totalorder %s23, 0
      %p249 = por %p247, %p248
      %p250 = scmp.le.s32.totalorder 1, %s17
      %p251 = scmp.lt.s32.totalorder %s17, 9
      %p252 = pnand %p250, %p251
      %p253 = pneg %p252
      // Predicated region
      $region9: #{forward.1} parent=5 // pred_check
        _
      $region10: #{forward.1} parent=5 // pred_check_branch
        %255 = sbr.rel (%p252) target = $region12
      $region11: #{forward.1} parent=5 // pred_region
        %s256 = ssub.s32 %s17, 1
        // Predicated region
        $region13: #{forward.1} parent=11 // pred_check
          %p257 = pneg %p130
        $region14: #{forward.1} parent=11 // pred_check_branch
          %259 = sbr.rel (%p257) target = $region16
        $region15: #{forward.1} parent=11 // pred_region
          _
        $region16: #{forward.1} parent=11 // pred_fallthru
          _
        // Predicated region
        $region17: #{forward.1} parent=11 // pred_check
          %p260 = pneg %p151
        $region18: #{forward.1} parent=11 // pred_check_branch
          %262 = sbr.rel (%p260) target = $region20
        $region19: #{forward.1} parent=11 // pred_region
          _
        $region20: #{forward.1} parent=11 // pred_fallthru
          _
        // Predicated region
        $region21: #{forward.1} parent=11 // pred_check
          %p263 = pneg %p172
        $region22: #{forward.1} parent=11 // pred_check_branch
          %265 = sbr.rel (%p263) target = $region24
        $region23: #{forward.1} parent=11 // pred_region
          _
        $region24: #{forward.1} parent=11 // pred_fallthru
          _
        // Predicated region
        $region25: #{forward.1} parent=11 // pred_check
          %p266 = pneg %p193
        $region26: #{forward.1} parent=11 // pred_check_branch
          %268 = sbr.rel (%p266) target = $region28
        $region27: #{forward.1} parent=11 // pred_region
          _
        $region28: #{forward.1} parent=11 // pred_fallthru
          _
        // Predicated region
        $region29: #{forward.1} parent=11 // pred_check
          %p269 = pneg %p214
        $region30: #{forward.1} parent=11 // pred_check_branch
          %271 = sbr.rel (%p269) target = $region32
        $region31: #{forward.1} parent=11 // pred_region
          _
        $region32: #{forward.1} parent=11 // pred_fallthru
          _
      $region12: #{forward.1} parent=5 // pred_fallthru
        _
      %p272 = scmp.lt.s32.totalorder %s17, 8
      // Predicated region
      $region33: #{forward.1} parent=5 // pred_check
        %p273 = pneg %p272
      $region34: #{forward.1} parent=5 // pred_check_branch
        %275 = sbr.rel (%p273) target = $region36
      $region35: #{forward.1} parent=5 // pred_region
        // Predicated region
        $region37: #{forward.1} parent=35 // pred_check
          %p276 = pneg %p49
        $region38: #{forward.1} parent=35 // pred_check_branch
          %278 = sbr.rel (%p276) target = $region40
        $region39: #{forward.1} parent=35 // pred_region
          %p279 = scmp.lt.s32.totalorder %s24, 1
          %s280 = scalar_select %p279, %s24, 1
          %s281 = smul.addr %s280, 4
          %s282 = smul.addr %s281, 8
          %s283 = scalar_lea.vmem %s0, %s282
        $region40: #{forward.1} parent=35 // pred_fallthru
          _
        // Predicated region
        $region41: #{forward.1} parent=35 // pred_check
          %p284 = pneg %p77
        $region42: #{forward.1} parent=35 // pred_check_branch
          %286 = sbr.rel (%p284) target = $region44
        $region43: #{forward.1} parent=35 // pred_region
          %p287 = scmp.lt.s32.totalorder %s24, 1
          %s288 = scalar_select %p287, %s24, 1
          %p289 = scmp.lt.s32.totalorder %s25, 3
          %s290 = scalar_select %p289, %s25, 3
          %s291 = smul.addr %s290, 2
          %s292 = smul.addr %s288, 8
          %s293 = sadd.s32 %s291, %s292
          %s294 = smul.addr %s293, 8
          %s295 = scalar_lea.vmem %s1, %s294
        $region44: #{forward.1} parent=35 // pred_fallthru
          _
        // Predicated region
        $region45: #{forward.1} parent=35 // pred_check
          %p296 = pneg %p103
        $region46: #{forward.1} parent=35 // pred_check_branch
          %298 = sbr.rel (%p296) target = $region48
        $region47: #{forward.1} parent=35 // pred_region
          %p299 = scmp.lt.s32.totalorder %s24, 1
          %s300 = scalar_select %p299, %s24, 1
          %s301 = smul.addr %s300, 8
          %s302 = scalar_lea.vmem %s2, %s301
        $region48: #{forward.1} parent=35 // pred_fallthru
          _
      $region36: #{forward.1} parent=5 // pred_fallthru
        _
      %p303 = scmp.le.s32.totalorder 1, %s17
      %p304 = scmp.lt.s32.totalorder %s17, 9
      %p305 = pnand %p303, %p304
      %p306 = pneg %p305
      // Predicated region
      $region49: #{forward.1} parent=5 // pred_check
        _
      $region50: #{forward.1} parent=5 // pred_check_branch
        %308 = sbr.rel (%p305) target = $region52
      $region51: #{forward.1} parent=5 // pred_region
        %s309 = ssub.s32 %s17, 1
        %p310 = scmp.lt.s32.totalorder %s26, 1
        %s311 = scalar_select %p310, %s26, 1
        %s312 = smul.addr %s311, 4
        %s313 = smul.addr %s312, 8
        %s314 = scalar_lea.vmem %s0, %s313
        %p315 = pneg %p55
        %p316 = pneg %p52
        %p317 = scmp.lt.s32.totalorder %s26, 1
        %s318 = scalar_select %p317, %s26, 1
        %p319 = scmp.lt.s32.totalorder %s27, 3
        %s320 = scalar_select %p319, %s27, 3
        %s321 = smul.addr %s320, 2
        %s322 = smul.addr %s318, 8
        %s323 = sadd.s32 %s321, %s322
        %s324 = smul.addr %s323, 8
        %s325 = scalar_lea.vmem %s1, %s324
        %p326 = pneg %p83
        %p327 = pneg %p80
        %p328 = scmp.lt.s32.totalorder %s26, 1
        %s329 = scalar_select %p328, %s26, 1
        %s330 = smul.addr %s329, 8
        %s331 = scalar_lea.vmem %s2, %s330
        %p332 = pneg %p109
        %p333 = pneg %p106
        %p334 = pneg %p130
        %p335 = pneg %p127
        %p336 = pneg %p151
        %p337 = pneg %p148
        %p338 = pneg %p172
        %p339 = pneg %p169
        %p340 = pneg %p193
        %p341 = pneg %p190
        %p342 = pneg %p214
        %p343 = pneg %p211
        %p344 = pneg %p242
        %p345 = pneg %p239
        %s346 = sand.u32 %s229, 1
        %s347 = scalar_lea.sflag [#allocation5], %s346
        %s348 = sand.u32 %s229, 1
        %s349 = smul.addr %s348, 16
        %s350 = scalar_lea.vmem [#allocation4], %s349
        %p351 = scmp.lt.s32.totalorder %s26, 1
        %s352 = scalar_select %p351, %s26, 1
        %s353 = smul.addr %s352, 4
        %s354 = smul.addr %s353, 8
        %s355 = scalar_lea.vmem %s0, %s354
        %p356 = scmp.lt.s32.totalorder %s26, 1
        %s357 = scalar_select %p356, %s26, 1
        %p358 = scmp.lt.s32.totalorder %s27, 3
        %s359 = scalar_select %p358, %s27, 3
        %s360 = smul.addr %s359, 2
        %s361 = smul.addr %s357, 8
        %s362 = sadd.s32 %s360, %s361
        %s363 = smul.addr %s362, 8
        %s364 = scalar_lea.vmem %s1, %s363
        %p365 = scmp.lt.s32.totalorder %s26, 1
        %s366 = scalar_select %p365, %s26, 1
        %s367 = smul.addr %s366, 8
        %s368 = scalar_lea.vmem %s2, %s367
        %p369 = scmp.eq.s32.totalorder %s27, 0
        // Predicated region
        $region53: #{forward.1} parent=51 // pred_check
          %p370 = pneg %p369
        $region54: #{forward.1} parent=51 // pred_check_branch
          %372 = sbr.rel (%p370) target = $region56
        $region55: #{forward.1} parent=51 // pred_region
          %v373 = vld [vmem:[%s355] sm:$0xff]
          %v374 = vld [vmem:[%s355 + $0x8] sm:$0xff]
          %v375 = vld [vmem:[%s355 + $0x10] sm:$0xff]
          %v376 = vld [vmem:[%s355 + $0x18] sm:$0xff]
          %v377 = vld [vmem:[%s5] sm:$0xff]
          %v378 = vld [vmem:[%s5 + $0x8] sm:$0xff]
          %vm379 = vcmask 130048
          %v381 = vsel %vm379, %v373, 0
          %v384 = vsel %vm379, %v374, 0
          %v387 = vsel %vm379, %v375, 0
          %v390 = vsel %vm379, %v376, 0
          %392 = vmatpush.msra.mxu0 0.0
          %393 = vmatpush.msra.mxu0 0.0
          %394 = vmatpush.msra.mxu0 0.0
          %395 = vmatpush.msra.mxu0 0.0
          %396 = vmatpush.msra.mxu0 0.0
          %397 = vmatpush.msra.mxu0 0.0
          %398 = vmatpush.msra.mxu0 0.0
          %399 = vmatpush.msra.mxu0 0.0
          %400 = vmatpush.msra.mxu0 0.0
          %401 = vmatpush.msra.mxu0 0.0
          %402 = vmatpush.msra.mxu0 0.0
          %403 = vmatpush.msra.mxu0 0.0
          %404 = vmatpush.msra.mxu0 0.0
          %405 = vmatpush.msra.mxu0 0.0
          %406 = vmatpush.msra.mxu0 %v378
          %407 = vmatpush.msra.mxu0 %v377
          %408 = vmatmul.f32.gmra.mxu0 %v381
          %v409 = vpop.f32.mrf.mxu0
          %v410 = vadd.f32 0.0, %v409
          %411 = vmatmul.f32.gmra.mxu0 %v384
          %v412 = vpop.f32.mrf.mxu0
          %v413 = vadd.f32 0.0, %v412
          %414 = vmatmul.f32.gmra.mxu0 %v387
          %v415 = vpop.f32.mrf.mxu0
          %v416 = vadd.f32 0.0, %v415
          %417 = vmatmul.f32.gmra.mxu0 %v390
          %v418 = vpop.f32.mrf.mxu0
          %v419 = vadd.f32 0.0, %v418
          %420 = vdwg.mxu0
          %v425 = vrot.slane %v413, 7
          %vm426 = vcmask 1041409
          %v427 = vsel %vm426, %v425, %v410
          %v428 = vrot.slane %v416, 6
          %vm429 = vcmask 1042434
          %v430 = vsel %vm429, %v428, %v427
          %v431 = vrot.slane %v419, 5
          %vm432 = vcmask 1043459
          %v433 = vsel %vm432, %v431, %v430
          %vm435 = vcmask 60416
          %436 = vst.msk [vmem:[#allocation2] sm:$0xf] %vm435, %v433
          %v437 = vsel %vm429, %v425, %v410
          %v438 = vsel %vm432, %v428, %v437
          %vm439 = vcmask 1044484
          %v440 = vsel %vm439, %v431, %v438
          %441 = vrot.lane.b32.xlu0 %v440, 8
          %v442 = vpop.permute.xlu0 %441
          %vm444 = vcmask 127041
          %445 = vst.msk [vmem:[#allocation2 - $0x1] sm:$0x1e] %vm444, %v442
          %v446 = vsel %vm432, %v425, %v410
          %v447 = vsel %vm439, %v428, %v446
          %vm448 = vcmask 1045509
          %v449 = vsel %vm448, %v431, %v447
          %450 = vrot.lane.b32.xlu0 %v449, 16
          %v451 = vpop.permute.xlu0 %450
          %vm453 = vcmask 193666
          %454 = vst.msk [vmem:[#allocation2 - $0x2] sm:$0x3c] %vm453, %v451
          %v455 = vsel %vm439, %v425, %v410
          %v456 = vsel %vm448, %v428, %v455
          %vm457 = vcmask 1046534
          %v458 = vsel %vm457, %v431, %v456
          %459 = vrot.lane.b32.xlu0 %v458, 24
          %v460 = vpop.permute.xlu0 %459
          %vm462 = vcmask 260291
          %463 = vst.msk [vmem:[#allocation2 - $0x3] sm:$0x78] %vm462, %v460
          %v464 = vsel %vm448, %v425, %v410
          %v465 = vsel %vm457, %v428, %v464
          %vm466 = vcmask 1047559
          %v467 = vsel %vm466, %v431, %v465
          %468 = vrot.lane.b32.xlu0 %v467, 32
          %v469 = vpop.permute.xlu0 %468
          %vm471 = vcmask 326916
          %472 = vst.msk [vmem:[#allocation2 - $0x4] sm:$0xf0] %vm471, %v469
          %v473 = vsel %vm457, %v425, %v410
          %v474 = vsel %vm466, %v428, %v473
          %475 = vrot.lane.b32.xlu0 %v474, 40
          %v476 = vpop.permute.xlu0 %475
          %477 = vrot.lane.b32.xlu0 %v431, 40
          %v478 = vpop.permute.xlu0 %477
          %vm481 = vcmask 392517
          %482 = vst.msk [vmem:[#allocation2 - $0x5] sm:$0xe0] %vm481, %v476
          %vm483 = vcmask 385344
          %484 = vst.msk [vmem:[#allocation2 + $0x3] sm:$0x1] %vm483, %v478
          %v485 = vsel %vm466, %v425, %v410
          %v486 = vsel %vm426, %v431, %v428
          %487 = vrot.lane.b32.xlu0 %v485, 48
          %v488 = vpop.permute.xlu0 %487
          %489 = vrot.lane.b32.xlu0 %v486, 48
          %v490 = vpop.permute.xlu0 %489
          %vm493 = vcmask 458118
          %494 = vst.msk [vmem:[#allocation2 - $0x6] sm:$0xc0] %vm493, %v488
          %vm495 = vcmask 451968
          %496 = vst.msk [vmem:[#allocation2 + $0x2] sm:$0x3] %vm495, %v490
          %v497 = vsel %vm426, %v428, %v425
          %v498 = vsel %vm429, %v431, %v497
          %499 = vrot.lane.b32.xlu0 %v410, 56
          %v500 = vpop.permute.xlu0 %499
          %501 = vrot.lane.b32.xlu0 %v498, 56
          %v502 = vpop.permute.xlu0 %501
          %vm505 = vcmask 523719
          %506 = vst.msk [vmem:[#allocation2 - $0x7] sm:$0x80] %vm505, %v500
          %vm507 = vcmask 518592
          %508 = vst.msk [vmem:[#allocation2 + $0x1] sm:$0x7] %vm507, %v502
          %509 = vrot.lane.b32.xlu0 %v433, 120
          %v510 = vpop.permute.xlu0 %509
          %512 = vst.msk [vmem:[#allocation2 + $0x4] sm:$0xf] %vm435, %v510
          %514 = vst.msk [vmem:[#allocation2 + $0x3] sm:$0x1e] %vm444, %v440
          %515 = vrot.lane.b32.xlu0 %v449, 8
          %v516 = vpop.permute.xlu0 %515
          %518 = vst.msk [vmem:[#allocation2 + $0x2] sm:$0x3c] %vm453, %v516
          %519 = vrot.lane.b32.xlu0 %v458, 16
          %v520 = vpop.permute.xlu0 %519
          %522 = vst.msk [vmem:[#allocation2 + $0x1] sm:$0x78] %vm462, %v520
          %523 = vrot.lane.b32.xlu0 %v467, 24
          %v524 = vpop.permute.xlu0 %523
          %526 = vst.msk [vmem:[#allocation2] sm:$0xf0] %vm471, %v524
          %527 = vrot.lane.b32.xlu0 %v474, 32
          %v528 = vpop.permute.xlu0 %527
          %529 = vrot.lane.b32.xlu0 %v431, 32
          %v530 = vpop.permute.xlu0 %529
          %533 = vst.msk [vmem:[#allocation2 - $0x1] sm:$0xe0] %vm481, %v528
          %534 = vst.msk [vmem:[#allocation2 + $0x7] sm:$0x1] %vm483, %v530
          %535 = vrot.lane.b32.xlu0 %v485, 40
          %v536 = vpop.permute.xlu0 %535
          %537 = vrot.lane.b32.xlu0 %v486, 40
          %v538 = vpop.permute.xlu0 %537
          %541 = vst.msk [vmem:[#allocation2 - $0x2] sm:$0xc0] %vm493, %v536
          %542 = vst.msk [vmem:[#allocation2 + $0x6] sm:$0x3] %vm495, %v538
          %543 = vrot.lane.b32.xlu0 %v410, 48
          %v544 = vpop.permute.xlu0 %543
          %545 = vrot.lane.b32.xlu0 %v498, 48
          %v546 = vpop.permute.xlu0 %545
          %549 = vst.msk [vmem:[#allocation2 - $0x3] sm:$0x80] %vm505, %v544
          %550 = vst.msk [vmem:[#allocation2 + $0x5] sm:$0x7] %vm507, %v546
          %v551 = vld [vmem:[%s355] sm:$0xff]
          %v552 = vld [vmem:[%s355 + $0x8] sm:$0xff]
          %v553 = vld [vmem:[%s355 + $0x10] sm:$0xff]
          %v554 = vld [vmem:[%s355 + $0x18] sm:$0xff]
          %v555 = vld [vmem:[%s5] sm:$0xff]
          %v556 = vld [vmem:[%s5 + $0x8] sm:$0xff]
          %561 = vrot.lane.b32.xlu0 %v551, 112
          %v562 = vpop.permute.xlu0 %561
          %563 = vrot.lane.b32.xlu0 %v552, 112
          %v564 = vpop.permute.xlu0 %563
          %565 = vrot.lane.b32.xlu0 %v553, 112
          %v566 = vpop.permute.xlu0 %565
          %567 = vrot.lane.b32.xlu0 %v554, 112
          %v568 = vpop.permute.xlu0 %567
          %v569 = vsel %vm379, %v562, 0
          %v571 = vsel %vm379, %v564, 0
          %v573 = vsel %vm379, %v566, 0
          %v575 = vsel %vm379, %v568, 0
          %577 = vmatpush.msra.mxu0 0.0
          %578 = vmatpush.msra.mxu0 0.0
          %579 = vmatpush.msra.mxu0 0.0
          %580 = vmatpush.msra.mxu0 0.0
          %581 = vmatpush.msra.mxu0 0.0
          %582 = vmatpush.msra.mxu0 0.0
          %583 = vmatpush.msra.mxu0 0.0
          %584 = vmatpush.msra.mxu0 0.0
          %585 = vmatpush.msra.mxu0 0.0
          %586 = vmatpush.msra.mxu0 0.0
          %587 = vmatpush.msra.mxu0 0.0
          %588 = vmatpush.msra.mxu0 0.0
          %589 = vmatpush.msra.mxu0 0.0
          %590 = vmatpush.msra.mxu0 0.0
          %591 = vmatpush.msra.mxu0 %v556
          %592 = vmatpush.msra.mxu0 %v555
          %593 = vmatmul.f32.gmra.mxu0 %v569
          %v594 = vpop.f32.mrf.mxu0
          %v595 = vadd.f32 0.0, %v594
          %596 = vmatmul.f32.gmra.mxu0 %v571
          %v597 = vpop.f32.mrf.mxu0
          %v598 = vadd.f32 0.0, %v597
          %599 = vmatmul.f32.gmra.mxu0 %v573
          %v600 = vpop.f32.mrf.mxu0
          %v601 = vadd.f32 0.0, %v600
          %602 = vmatmul.f32.gmra.mxu0 %v575
          %v603 = vpop.f32.mrf.mxu0
          %v604 = vadd.f32 0.0, %v603
          %605 = vdwg.mxu0
          %v610 = vrot.slane %v598, 7
          %v611 = vsel %vm426, %v610, %v595
          %v612 = vrot.slane %v601, 6
          %v613 = vsel %vm429, %v612, %v611
          %v614 = vrot.slane %v604, 5
          %v615 = vsel %vm432, %v614, %v613
          %617 = vst.msk [vmem:[#allocation2 + $0x8] sm:$0xf] %vm435, %v615
          %v618 = vsel %vm429, %v610, %v595
          %v619 = vsel %vm432, %v612, %v618
          %v620 = vsel %vm439, %v614, %v619
          %621 = vrot.lane.b32.xlu0 %v620, 8
          %v622 = vpop.permute.xlu0 %621
          %624 = vst.msk [vmem:[#allocation2 + $0x7] sm:$0x1e] %vm444, %v622
          %v625 = vsel %vm432, %v610, %v595
          %v626 = vsel %vm439, %v612, %v625
          %v627 = vsel %vm448, %v614, %v626
          %628 = vrot.lane.b32.xlu0 %v627, 16
          %v629 = vpop.permute.xlu0 %628
          %631 = vst.msk [vmem:[#allocation2 + $0x6] sm:$0x3c] %vm453, %v629
          %v632 = vsel %vm439, %v610, %v595
          %v633 = vsel %vm448, %v612, %v632
          %v634 = vsel %vm457, %v614, %v633
          %635 = vrot.lane.b32.xlu0 %v634, 24
          %v636 = vpop.permute.xlu0 %635
          %638 = vst.msk [vmem:[#allocation2 + $0x5] sm:$0x78] %vm462, %v636
          %v639 = vsel %vm448, %v610, %v595
          %v640 = vsel %vm457, %v612, %v639
          %v641 = vsel %vm466, %v614, %v640
          %642 = vrot.lane.b32.xlu0 %v641, 32
          %v643 = vpop.permute.xlu0 %642
          %645 = vst.msk [vmem:[#allocation2 + $0x4] sm:$0xf0] %vm471, %v643
          %v646 = vsel %vm457, %v610, %v595
          %v647 = vsel %vm466, %v612, %v646
          %648 = vrot.lane.b32.xlu0 %v647, 40
          %v649 = vpop.permute.xlu0 %648
          %650 = vrot.lane.b32.xlu0 %v614, 40
          %v651 = vpop.permute.xlu0 %650
          %654 = vst.msk [vmem:[#allocation2 + $0x3] sm:$0xe0] %vm481, %v649
          %655 = vst.msk [vmem:[#allocation2 + $0xb] sm:$0x1] %vm483, %v651
          %v656 = vsel %vm466, %v610, %v595
          %v657 = vsel %vm426, %v614, %v612
          %658 = vrot.lane.b32.xlu0 %v656, 48
          %v659 = vpop.permute.xlu0 %658
          %660 = vrot.lane.b32.xlu0 %v657, 48
          %v661 = vpop.permute.xlu0 %660
          %664 = vst.msk [vmem:[#allocation2 + $0x2] sm:$0xc0] %vm493, %v659
          %665 = vst.msk [vmem:[#allocation2 + $0xa] sm:$0x3] %vm495, %v661
          %v666 = vsel %vm426, %v612, %v610
          %v667 = vsel %vm429, %v614, %v666
          %668 = vrot.lane.b32.xlu0 %v595, 56
          %v669 = vpop.permute.xlu0 %668
          %670 = vrot.lane.b32.xlu0 %v667, 56
          %v671 = vpop.permute.xlu0 %670
          %674 = vst.msk [vmem:[#allocation2 + $0x1] sm:$0x80] %vm505, %v669
          %675 = vst.msk [vmem:[#allocation2 + $0x9] sm:$0x7] %vm507, %v671
          %676 = vrot.lane.b32.xlu0 %v615, 120
          %v677 = vpop.permute.xlu0 %676
          %679 = vst.msk [vmem:[#allocation2 + $0xc] sm:$0xf] %vm435, %v677
          %681 = vst.msk [vmem:[#allocation2 + $0xb] sm:$0x1e] %vm444, %v620
          %682 = vrot.lane.b32.xlu0 %v627, 8
          %v683 = vpop.permute.xlu0 %682
          %685 = vst.msk [vmem:[#allocation2 + $0xa] sm:$0x3c] %vm453, %v683
          %686 = vrot.lane.b32.xlu0 %v634, 16
          %v687 = vpop.permute.xlu0 %686
          %689 = vst.msk [vmem:[#allocation2 + $0x9] sm:$0x78] %vm462, %v687
          %690 = vrot.lane.b32.xlu0 %v641, 24
          %v691 = vpop.permute.xlu0 %690
          %693 = vst.msk [vmem:[#allocation2 + $0x8] sm:$0xf0] %vm471, %v691
          %694 = vrot.lane.b32.xlu0 %v647, 32
          %v695 = vpop.permute.xlu0 %694
          %696 = vrot.lane.b32.xlu0 %v614, 32
          %v697 = vpop.permute.xlu0 %696
          %700 = vst.msk [vmem:[#allocation2 + $0x7] sm:$0xe0] %vm481, %v695
          %701 = vst.msk [vmem:[#allocation2 + $0xf] sm:$0x1] %vm483, %v697
          %702 = vrot.lane.b32.xlu0 %v656, 40
          %v703 = vpop.permute.xlu0 %702
          %704 = vrot.lane.b32.xlu0 %v657, 40
          %v705 = vpop.permute.xlu0 %704
          %708 = vst.msk [vmem:[#allocation2 + $0x6] sm:$0xc0] %vm493, %v703
          %709 = vst.msk [vmem:[#allocation2 + $0xe] sm:$0x3] %vm495, %v705
          %710 = vrot.lane.b32.xlu0 %v595, 48
          %v711 = vpop.permute.xlu0 %710
          %712 = vrot.lane.b32.xlu0 %v667, 48
          %v713 = vpop.permute.xlu0 %712
          %716 = vst.msk [vmem:[#allocation2 + $0x5] sm:$0x80] %vm505, %v711
          %717 = vst.msk [vmem:[#allocation2 + $0xd] sm:$0x7] %vm507, %v713
          %v718 = vld [vmem:[%s368] sm:$0xff]
          %vm719 = vcmask 523264
          %720 = vst.msk [vmem:[#allocation2 + $0x10] sm:$0xff] %vm719, %v718
          %v721 = vld [vmem:[%s3] sm:$0xf]
          %v722 = vld [vmem:[#allocation2] sm:$0xff]
          %v723 = vld [vmem:[#allocation2 + $0x8] sm:$0xff]
          %v724 = vld [vmem:[#allocation2 + $0x10] sm:$0xff]
          %726 = vset.pattern.permute.xlu0 24
          %727 = vperm.xlu0 %726, %v721
          %v728 = vpop.permute.xlu0 %727
          %vm730 = vcmask 195584
          %v731 = vsel %vm730, %v721, 0
          %733 = vmatpush.msra.mxu0 0.0
          %734 = vmatpush.msra.mxu0 0.0
          %735 = vmatpush.msra.mxu0 0.0
          %736 = vmatpush.msra.mxu0 0.0
          %737 = vmatpush.msra.mxu0 0.0
          %738 = vmatpush.msra.mxu0 0.0
          %739 = vmatpush.msra.mxu0 0.0
          %740 = vmatpush.msra.mxu0 0.0
          %741 = vmatpush.msra.mxu0 0.0
          %742 = vmatpush.msra.mxu0 0.0
          %743 = vmatpush.msra.mxu0 0.0
          %744 = vmatpush.msra.mxu0 0.0
          %745 = vmatpush.msra.mxu0 0.0
          %746 = vmatpush.msra.mxu0 %v724
          %747 = vmatpush.msra.mxu0 %v723
          %748 = vmatpush.msra.mxu0 %v722
          %749 = vmatmul.f32.gmra.mxu0 %v731
          %v750 = vpop.f32.mrf.mxu0
          %v751 = vadd.f32 %v728, %v750
          %752 = vdwg.mxu0
          %v753 = vmax.f32 %v751, 0.0
          %v754 = vld [vmem:[%s4] sm:$0xf]
          %756 = vset.pattern.permute.xlu0 4
          %757 = vperm.xlu0 %756, %v754
          %v758 = vpop.permute.xlu0 %757
          %vm760 = vcmask 31744
          %v761 = vsel %vm760, %v754, 0
          %vm763 = vcmask 1043456
          %v765 = vsel %vm763, %v753, 0
          %767 = vmatpush.msra.mxu0 0.0
          %768 = vmatpush.msra.mxu0 0.0
          %769 = vmatpush.msra.mxu0 0.0
          %770 = vmatpush.msra.mxu0 0.0
          %771 = vmatpush.msra.mxu0 0.0
          %772 = vmatpush.msra.mxu0 0.0
          %773 = vmatpush.msra.mxu0 0.0
          %774 = vmatpush.msra.mxu0 0.0
          %775 = vmatpush.msra.mxu0 0.0
          %776 = vmatpush.msra.mxu0 0.0
          %777 = vmatpush.msra.mxu0 0.0
          %778 = vmatpush.msra.mxu0 0.0
          %779 = vmatpush.msra.mxu0 0.0
          %780 = vmatpush.msra.mxu0 0.0
          %781 = vmatpush.msra.mxu0 0.0
          %782 = vmatpush.msra.mxu0 %v765
          %783 = vmatmul.f32.gmra.mxu0 %v761
          %v784 = vpop.f32.mrf.mxu0
          %v785 = vadd.f32 %v758, %v784
          %786 = vdwg.mxu0
          %v787 = vxor.u32 %v785, 2147483648
          %v788 = vmul.f32 %v787, 1.442695
          %v789 = vpow.pop %v788
          %v790 = vadd.f32 %v789, 1.0
          %v791 = vrcp.pop %v790
          %v792 = vmul.f32 %v790, %v791
          %v793 = vsub.f32 1.0, %v792
          %v794 = vmul.f32 %v791, %v793
          %v795 = vadd.f32 %v791, %v794
          %vm796 = vweird.f32 %v790
          %vm797 = vweird.f32 %v791
          %vm798 = vmor %vm796, %vm797
          %v799 = vsel %vm798, %v791, %v795
          %v800 = vand.u32 2147483647, %v790
          %vm801 = vcmp.eq.f32.partialorder %v800, 8.507059e+37
          %v802 = vand.u32 %v790, 2147483648
          %v803 = vor.u32 1.1754944e-38, %v802
          %v804 = vsel %vm801, %v803, %v799
          %v805 = vmul.f32 1.0, %v804
          %v807 = vrot.slane %v805, 1
          %v808 = vrot.slane %v805, 2
          %v809 = vrot.slane %v805, 3
          %vm813 = vcmask 57344
          %814 = vst.msk [vmem:[#allocation3] sm:$0x1] %vm813, %v805
          %815 = vst.msk [vmem:[#allocation3 + $0x8] sm:$0x1] %vm813, %v807
          %816 = vst.msk [vmem:[#allocation3 + $0x10] sm:$0x1] %vm813, %v808
          %817 = vst.msk [vmem:[#allocation3 + $0x18] sm:$0x1] %vm813, %v809
          %v818 = vperm.slane %v805, 0
          %v819 = vperm.slane %v807, 0
          %v820 = vperm.slane %v808, 0
          %v821 = vperm.slane %v809, 0
          %822 = vrot.lane.b32.xlu0 %v818, 120
          %v823 = vpop.permute.xlu0 %822
          %824 = vrot.lane.b32.xlu0 %v819, 120
          %v825 = vpop.permute.xlu0 %824
          %826 = vrot.lane.b32.xlu0 %v820, 120
          %v827 = vpop.permute.xlu0 %826
          %828 = vrot.lane.b32.xlu0 %v821, 120
          %v829 = vpop.permute.xlu0 %828
          %834 = vst.msk [vmem:[#allocation3 + $0x1] sm:$0x1] %vm813, %v823
          %835 = vst.msk [vmem:[#allocation3 + $0x9] sm:$0x1] %vm813, %v825
          %836 = vst.msk [vmem:[#allocation3 + $0x11] sm:$0x1] %vm813, %v827
          %837 = vst.msk [vmem:[#allocation3 + $0x19] sm:$0x1] %vm813, %v829
          %838 = vrot.lane.b32.xlu0 %v818, 112
          %v839 = vpop.permute.xlu0 %838
          %840 = vrot.lane.b32.xlu0 %v819, 112
          %v841 = vpop.permute.xlu0 %840
          %842 = vrot.lane.b32.xlu0 %v820, 112
          %v843 = vpop.permute.xlu0 %842
          %844 = vrot.lane.b32.xlu0 %v821, 112
          %v845 = vpop.permute.xlu0 %844
          %850 = vst.msk [vmem:[#allocation3 + $0x2] sm:$0x1] %vm813, %v839
          %851 = vst.msk [vmem:[#allocation3 + $0xa] sm:$0x1] %vm813, %v841
          %852 = vst.msk [vmem:[#allocation3 + $0x12] sm:$0x1] %vm813, %v843
          %853 = vst.msk [vmem:[#allocation3 + $0x1a] sm:$0x1] %vm813, %v845
          %854 = vrot.lane.b32.xlu0 %v818, 104
          %v855 = vpop.permute.xlu0 %854
          %856 = vrot.lane.b32.xlu0 %v819, 104
          %v857 = vpop.permute.xlu0 %856
          %858 = vrot.lane.b32.xlu0 %v820, 104
          %v859 = vpop.permute.xlu0 %858
          %860 = vrot.lane.b32.xlu0 %v821, 104
          %v861 = vpop.permute.xlu0 %860
          %866 = vst.msk [vmem:[#allocation3 + $0x3] sm:$0x1] %vm813, %v855
          %867 = vst.msk [vmem:[#allocation3 + $0xb] sm:$0x1] %vm813, %v857
          %868 = vst.msk [vmem:[#allocation3 + $0x13] sm:$0x1] %vm813, %v859
          %869 = vst.msk [vmem:[#allocation3 + $0x1b] sm:$0x1] %vm813, %v861
          %870 = vrot.lane.b32.xlu0 %v818, 96
          %v871 = vpop.permute.xlu0 %870
          %872 = vrot.lane.b32.xlu0 %v819, 96
          %v873 = vpop.permute.xlu0 %872
          %874 = vrot.lane.b32.xlu0 %v820, 96
          %v875 = vpop.permute.xlu0 %874
          %876 = vrot.lane.b32.xlu0 %v821, 96
          %v877 = vpop.permute.xlu0 %876
          %882 = vst.msk [vmem:[#allocation3 + $0x4] sm:$0x1] %vm813, %v871
          %883 = vst.msk [vmem:[#allocation3 + $0xc] sm:$0x1] %vm813, %v873
          %884 = vst.msk [vmem:[#allocation3 + $0x14] sm:$0x1] %vm813, %v875
          %885 = vst.msk [vmem:[#allocation3 + $0x1c] sm:$0x1] %vm813, %v877
          %886 = vrot.lane.b32.xlu0 %v818, 88
          %v887 = vpop.permute.xlu0 %886
          %888 = vrot.lane.b32.xlu0 %v819, 88
          %v889 = vpop.permute.xlu0 %888
          %890 = vrot.lane.b32.xlu0 %v820, 88
          %v891 = vpop.permute.xlu0 %890
          %892 = vrot.lane.b32.xlu0 %v821, 88
          %v893 = vpop.permute.xlu0 %892
          %898 = vst.msk [vmem:[#allocation3 + $0x5] sm:$0x1] %vm813, %v887
          %899 = vst.msk [vmem:[#allocation3 + $0xd] sm:$0x1] %vm813, %v889
          %900 = vst.msk [vmem:[#allocation3 + $0x15] sm:$0x1] %vm813, %v891
          %901 = vst.msk [vmem:[#allocation3 + $0x1d] sm:$0x1] %vm813, %v893
          %902 = vrot.lane.b32.xlu0 %v818, 80
          %v903 = vpop.permute.xlu0 %902
          %904 = vrot.lane.b32.xlu0 %v819, 80
          %v905 = vpop.permute.xlu0 %904
          %906 = vrot.lane.b32.xlu0 %v820, 80
          %v907 = vpop.permute.xlu0 %906
          %908 = vrot.lane.b32.xlu0 %v821, 80
          %v909 = vpop.permute.xlu0 %908
          %914 = vst.msk [vmem:[#allocation3 + $0x6] sm:$0x1] %vm813, %v903
          %915 = vst.msk [vmem:[#allocation3 + $0xe] sm:$0x1] %vm813, %v905
          %916 = vst.msk [vmem:[#allocation3 + $0x16] sm:$0x1] %vm813, %v907
          %917 = vst.msk [vmem:[#allocation3 + $0x1e] sm:$0x1] %vm813, %v909
          %918 = vrot.lane.b32.xlu0 %v818, 72
          %v919 = vpop.permute.xlu0 %918
          %920 = vrot.lane.b32.xlu0 %v819, 72
          %v921 = vpop.permute.xlu0 %920
          %922 = vrot.lane.b32.xlu0 %v820, 72
          %v923 = vpop.permute.xlu0 %922
          %924 = vrot.lane.b32.xlu0 %v821, 72
          %v925 = vpop.permute.xlu0 %924
          %930 = vst.msk [vmem:[#allocation3 + $0x7] sm:$0x1] %vm813, %v919
          %931 = vst.msk [vmem:[#allocation3 + $0xf] sm:$0x1] %vm813, %v921
          %932 = vst.msk [vmem:[#allocation3 + $0x17] sm:$0x1] %vm813, %v923
          %933 = vst.msk [vmem:[#allocation3 + $0x1f] sm:$0x1] %vm813, %v925
        $region56: #{forward.1} parent=51 // pred_fallthru
          _
        %v934 = vld [vmem:[%s364] sm:$0xff]
        %v935 = vld [vmem:[%s364 + $0x8] sm:$0xff]
        %s936 = smul.u32 %s27, 8
        %s937 = scalar_lea.vmem [#allocation3], %s936
        %v938 = vld [vmem:[%s937] sm:$0xff]
        %v939 = vld [vmem:[%s6] sm:$0xff]
        %v940 = vld [vmem:[%s6 + $0x8] sm:$0xff]
        %vm941 = vcmask 130048
        %v943 = vsel %vm941, %v934, 0
        %v946 = vsel %vm941, %v935, 0
        %948 = vmatpush.msra.mxu0 0.0
        %949 = vmatpush.msra.mxu0 0.0
        %950 = vmatpush.msra.mxu0 0.0
        %951 = vmatpush.msra.mxu0 0.0
        %952 = vmatpush.msra.mxu0 0.0
        %953 = vmatpush.msra.mxu0 0.0
        %954 = vmatpush.msra.mxu0 0.0
        %955 = vmatpush.msra.mxu0 0.0
        %956 = vmatpush.msra.mxu0 0.0
        %957 = vmatpush.msra.mxu0 0.0
        %958 = vmatpush.msra.mxu0 0.0
        %959 = vmatpush.msra.mxu0 0.0
        %960 = vmatpush.msra.mxu0 0.0
        %961 = vmatpush.msra.mxu0 0.0
        %962 = vmatpush.msra.mxu0 %v940
        %963 = vmatpush.msra.mxu0 %v939
        %964 = vmatmul.f32.gmra.mxu0 %v943
        %v965 = vpop.f32.mrf.mxu0
        %v966 = vadd.f32 0.0, %v965
        %967 = vmatmul.f32.gmra.mxu0 %v946
        %v968 = vpop.f32.mrf.mxu0
        %v969 = vadd.f32 0.0, %v968
        %970 = vdwg.mxu0
        %vm971 = vcmask 64512
        %v973 = vsel %vm971, %v966, 0
        %v976 = vsel %vm971, %v969, 0
        %978 = vmatpush.msra.mxu0 0.0
        %979 = vmatpush.msra.mxu0 0.0
        %980 = vmatpush.msra.mxu0 0.0
        %981 = vmatpush.msra.mxu0 0.0
        %982 = vmatpush.msra.mxu0 0.0
        %983 = vmatpush.msra.mxu0 0.0
        %984 = vmatpush.msra.mxu0 0.0
        %985 = vmatpush.msra.mxu0 0.0
        %986 = vmatpush.msra.mxu0 0.0
        %987 = vmatpush.msra.mxu0 0.0
        %988 = vmatpush.msra.mxu0 0.0
        %989 = vmatpush.msra.mxu0 0.0
        %990 = vmatpush.msra.mxu0 0.0
        %991 = vmatpush.msra.mxu0 0.0
        %992 = vmatpush.msra.mxu0 0.0
        %993 = vmatpush.msra.mxu0 %v938
        %994 = vmatmul.f32.gmra.mxu0 %v973
        %v995 = vpop.f32.mrf.mxu0
        %v996 = vadd.f32 0.0, %v995
        %997 = vmatmul.f32.gmra.mxu0 %v976
        %v998 = vpop.f32.mrf.mxu0
        %v999 = vadd.f32 0.0, %v998
        %1000 = vdwg.mxu0
        %v1001 = vld [vmem:[%s7] sm:$0xff]
        %v1003 = vsel %vm971, %v996, 0
        %v1006 = vsel %vm971, %v999, 0
        %1008 = vmatpush.msra.mxu0 0.0
        %1009 = vmatpush.msra.mxu0 0.0
        %1010 = vmatpush.msra.mxu0 0.0
        %1011 = vmatpush.msra.mxu0 0.0
        %1012 = vmatpush.msra.mxu0 0.0
        %1013 = vmatpush.msra.mxu0 0.0
        %1014 = vmatpush.msra.mxu0 0.0
        %1015 = vmatpush.msra.mxu0 0.0
        %1016 = vmatpush.msra.mxu0 0.0
        %1017 = vmatpush.msra.mxu0 0.0
        %1018 = vmatpush.msra.mxu0 0.0
        %1019 = vmatpush.msra.mxu0 0.0
        %1020 = vmatpush.msra.mxu0 0.0
        %1021 = vmatpush.msra.mxu0 0.0
        %1022 = vmatpush.msra.mxu0 0.0
        %1023 = vmatpush.msra.mxu0 %v1001
        %1024 = vmatmul.f32.gmra.mxu0 %v1003
        %v1025 = vpop.f32.mrf.mxu0
        %v1026 = vadd.f32 0.0, %v1025
        %1027 = vmatmul.f32.gmra.mxu0 %v1006
        %v1028 = vpop.f32.mrf.mxu0
        %v1029 = vadd.f32 0.0, %v1028
        %1030 = vdwg.mxu0
        %1031 = vst.msk [vmem:[%s350] sm:$0xff] %vm941, %v1026
        %1032 = vst.msk [vmem:[%s350 + $0x8] sm:$0xff] %vm941, %v1029
        %s1033 = sand.u32 %s229, 1
        %s1034 = scalar_lea.sflag [#allocation5], %s1033
        %s1035 = sand.u32 %s229, 1
        %s1036 = smul.addr %s1035, 16
        %s1037 = scalar_lea.vmem [#allocation4], %s1036
        // Predicated region
        $region57: #{forward.1} parent=51 // pred_check
          %p1038 = pneg %p239
        $region58: #{forward.1} parent=51 // pred_check_branch
          %1040 = sbr.rel (%p1038) target = $region60
        $region59: #{forward.1} parent=51 // pred_region
          %1042 = vsyncadd %s1034, 0
          %s1043 = smul.addr %s27, 2
          %s1044 = smul.addr %s26, 8
          %s1045 = sadd.s32 %s1043, %s1044
          %s1046 = smul.addr %s1045, 8
          %s1047 = scalar_lea.hbm %s8, %s1046
          %s1048 = sshll.u32 %s1037, 4
          %s1049 = int_to_ptr.vmem [resolvable:$true] %s1048
          %s1050 = sshll.u32 %s1047, 4
          %s1051 = int_to_ptr.hbm [resolvable:$true] %s1050
          %1056 = dma.vmem_to_hbm [thread:$0]  %s1049, 256, %s1051, %s1034, 128, 128, 8
        $region60: #{forward.1} parent=51 // pred_fallthru
          _
      $region52: #{forward.1} parent=5 // pred_fallthru
        _
      %p1057 = scmp.le.s32.totalorder 2, %s17
      // Predicated region
      $region61: #{forward.1} parent=5 // pred_check
        %p1058 = pneg %p1057
      $region62: #{forward.1} parent=5 // pred_check_branch
        %1060 = sbr.rel (%p1058) target = $region64
      $region63: #{forward.1} parent=5 // pred_region
        %s1061 = ssub.s32 %s17, 2
        // Predicated region
        $region65: #{forward.1} parent=63 // pred_check
          %p1062 = pneg %p245
        $region66: #{forward.1} parent=63 // pred_check_branch
          %1064 = sbr.rel (%p1062) target = $region68
        $region67: #{forward.1} parent=63 // pred_region
          %s1065 = sand.u32 %s230, 1
          %s1066 = scalar_lea.sflag [#allocation5], %s1065
          %s1067 = sand.u32 %s230, 1
          %s1068 = smul.addr %s1067, 16
          %s1069 = scalar_lea.vmem [#allocation4], %s1068
          %1071 = dma.done %s1066, 256
        $region68: #{forward.1} parent=63 // pred_fallthru
          _
      $region64: #{forward.1} parent=5 // pred_fallthru
        _
    $region6: #{forward.1} parent=1 // loop_footer
      %s21 = sadd.s32 1, %s17
    $region7: #{forward.1} parent=1 // loop_footer_branch
      %16 = sbr.rel target = $region3
    $region8: #{forward.1} parent=1 // loop_exit
      _
    %1072 = vsyncpa [#allocation5], 1
    %s1073 = scalar_lea.sflag [#allocation5], 1
    %1074 = vsyncpa %s1073, 1

</llo_original>
